<compile_context>
chip_gen: v5e
topology: v5e:2x2
jax: 0.10.0
libtpu: 0.0.40
codegen_flags: <defaults>
</compile_context>

<pallas_src>
import functools
import math

import jax
import jax.numpy as jnp
import numpy as np
from jax.experimental import pallas as pl
from jax.experimental.pallas import tpu as pltpu

LANE = 128   # TPU lane width: every feature axis padded to a multiple of this
SUB = 16     # sublane granularity covering both f32 (8,128) and bf16 (16,128) tiles

try:  # per-generation VMEM ceiling (64 MiB/TC on v7x, 128 MiB on v5e/v6e)
    _VMEM_CAP = int(pltpu.get_tpu_info().vmem_capacity_bytes)
except Exception:  # pragma: no cover - fallback if query unavailable
    _VMEM_CAP = 64 * 1024 * 1024


def _round_up(x, m):
    return (x + m - 1) // m * m


def _pad2d(a, rows, cols):
    return jnp.pad(a, ((0, rows - a.shape[0]), (0, cols - a.shape[1])))


# ------------------------------------------------------------------ glue ----
def timestep_embedding(timesteps, dim, max_period=10000):
    half = dim // 2
    freqs = jnp.exp(
        -math.log(max_period) * jnp.arange(half, dtype=jnp.float32) / half
    )
    args = timesteps[:, None].astype(jnp.float32) * freqs[None, :]
    emb = jnp.concatenate([jnp.cos(args), jnp.sin(args)], axis=-1)
    if dim % 2:
        emb = jnp.concatenate([emb, jnp.zeros_like(emb[:, :1])], axis=-1)
    return emb


# ---------------------------------------------------------------- kernel ----
def make_kernel(n_in, n_in2, n_out, d_h, mxu_dtype):
    """Kernel body for a static layer-count configuration.

    Inputs: one packed (tb, DP) slab, one stacked (L, DP, DP) weight operand
    (mxu_dtype) and one stacked (L, 1, DP) f32 bias operand.  Every matmul is a
    full-lane MXU op; accumulation / bias / tanh stay in f32.
    """

    def kernel(slab_ref, w_ref, b_ref, out_ref):
        slab = slab_ref[...]

        def lin(a, l):                       # a @ W[l] + b[l], f32 accumulate
            return jnp.dot(a, w_ref[l], preferred_element_type=jnp.float32) + b_ref[l]

        # tower 1: emb_layer folded into layer 0, input = packed slab
        h = jnp.tanh(lin(slab, 0))
        for l in range(1, n_in):
            h = jnp.tanh(lin(h.astype(mxu_dtype), l))

        # tower 2: emb_layer folded into layer 0, input = packed slab
        hu = jnp.tanh(lin(slab, n_in))
        for l in range(1, n_in2):
            hu = jnp.tanh(lin(hu.astype(mxu_dtype), n_in + l))

        # out tower: cat([h, h_U]) fused via XLU roll + VPU add (padding lanes
        # of both activations are exactly zero, so this is a real concatenate),
        # then a single matmul against the stacked out_layers[0] weight.
        comb = h + pltpu.roll(hu, shift=d_h, axis=1)
        z = lin(comb.astype(mxu_dtype), n_in + n_in2)
        for l in range(n_in + n_in2 + 1, n_in + n_in2 + n_out):
            z = lin(jnp.tanh(z).astype(mxu_dtype), l)

        out_ref[...] = z                     # lane-dense padded f32 slab

    return kernel


# --------------------------------------------------------------- wrapper ----
@functools.partial(jax.jit, static_argnames=("emb_size", "tb", "mxu_dtype"))
def dnn_onehot_forward(params, x, timesteps, x_U, *, emb_size,
                       tb=None, mxu_dtype=jnp.bfloat16):
    """Pallas forward of the DNNOneHot reverse-diffusion MLP towers.

    norm=False in this config; nn.Dropout is identity at inference.
    bf16 MXU operands are recommended on v5e/v6e/v7x (accumulation stays f32).
    """
    N = x.shape[0]
    x_U = x_U.reshape(N, -1)
    temb = timestep_embedding(timesteps, emb_size)

    d_x, d_xu = x.shape[1], x_U.shape[1]
    n_in = len(params["in_layers"])
    n_in2 = len(params["in_layers2"])
    n_out = len(params["out_layers"])
    d_h = params["in_layers"][-1][0].shape[1]        # real width of tower-1 output
    d_hu = params["in_layers2"][-1][0].shape[1]      # real width of tower-2 output
    out_dim = params["out_layers"][-1][0].shape[1]
    slab_w = d_x + d_xu + emb_size

    # One uniform padded feature width DP: every weight is (DP, DP), every
    # activation is (tb, DP); lane-dense, single stacked weight operand.
    real_dims = [slab_w, d_h + d_hu]
    for tower in ("in_layers", "in_layers2", "out_layers"):
        for w, _ in params[tower]:
            real_dims += [w.shape[0], w.shape[1]]
    DP = _round_up(max(real_dims), LANE)
    assert d_h + d_hu <= DP                          # roll-fused concat is valid

    # ---- batch tiling: tiles up to 512 rows, >=2 grid steps when possible
    # (keeps both v7x TensorCores busy via dimension_semantics="parallel").
    if tb is None:
        tb = min(512, max(SUB, _round_up((N + 1) // 2, SUB)))
    tb = _round_up(tb, SUB)
    Np = _round_up(N, tb)
    grid = (Np // tb,)

    # ---- packed lane-dense input slab: [x | x_U | temb] ---------------------
    slab = jnp.concatenate(
        [x.astype(jnp.float32), x_U.astype(jnp.float32), temb], axis=-1)
    slab = _pad2d(slab, Np, DP).astype(mxu_dtype)

    # ---- padded / folded weights (built in f32, cast once) ------------------
    f32 = jnp.float32
    Ws, Bs = [], []

    def add(row_blocks, bias):
        """row_blocks: list of (row_offset, block). Builds one (DP, DP) weight."""
        w = jnp.zeros((DP, DP), f32)
        for off, blk in row_blocks:
            blk = jnp.asarray(blk, f32)
            w = w.at[off:off + blk.shape[0], :blk.shape[1]].set(blk)
        bias = jnp.asarray(bias, f32)
        b = jnp.zeros((1, DP), f32).at[0, :bias.shape[-1]].set(bias)
        Ws.append(w)
        Bs.append(b)

    we = jnp.asarray(params["emb"][0], f32)
    be = jnp.asarray(params["emb"][1], f32)

    # tower 1 layer 0: x part at slab cols [0, d_x), emb_layer folded into the
    # temb columns at [d_x + d_xu, d_x + d_xu + emb_size)
    w0 = jnp.asarray(params["in_layers"][0][0], f32)
    b0 = jnp.asarray(params["in_layers"][0][1], f32)
    w_emb = w0[d_x:]
    add([(0, w0[:d_x]), (d_x + d_xu, we @ w_emb)], b0 + be @ w_emb)
    for w, b in params["in_layers"][1:]:
        add([(0, w)], b)

    # tower 2 layer 0: x_U part at slab cols [d_x, d_x + d_xu), emb fold idem
    w0 = jnp.asarray(params["in_layers2"][0][0], f32)
    b0 = jnp.asarray(params["in_layers2"][0][1], f32)
    w_emb = w0[d_xu:]
    add([(d_x, w0[:d_xu]), (d_x + d_xu, we @ w_emb)], b0 + be @ w_emb)
    for w, b in params["in_layers2"][1:]:
        add([(0, w)], b)

    # out tower: layer 0's rows [0, d_h + d_hu) already match the roll-fused
    # activation layout ([h | h_U]), so it is padded as-is.
    for w, b in params["out_layers"]:
        add([(0, w)], b)

    W = jnp.stack(Ws).astype(mxu_dtype)              # (L, DP, DP)
    B = jnp.stack(Bs)                                 # (L, 1, DP) f32
    L = len(Ws)                                       # n_in + n_in2 + n_out

    # ---- cost estimate & VMEM budget ----------------------------------------
    act_bytes = jnp.dtype(mxu_dtype).itemsize
    w_bytes = L * DP * DP * act_bytes
    b_bytes = L * DP * 4
    cost = pl.CostEstimate(
        flops=2 * L * DP * DP * Np,
        transcendentals=(L - 1) * DP * Np,
        bytes_accessed=Np * DP * (act_bytes + 4) + w_bytes + b_bytes)

    # slab/out tiles double-buffered; weights/biases single-buffered (Buffered(1));
    # headroom for live f32 activation temporaries.  Capped per generation.
    tile_bytes = tb * DP * (act_bytes + 4)
    vmem_need = 2 * tile_bytes + w_bytes + b_bytes + 6 * tb * DP * 4
    vmem_limit = int(min(int(_VMEM_CAP * 3 // 4),
                         max(16 * 1024 * 1024, 2 * vmem_need)))

    kernel = make_kernel(n_in, n_in2, n_out, d_h, mxu_dtype)
    const3 = lambda i: (0, 0, 0)

    out_p = pl.pallas_call(
        kernel,
        out_shape=jax.ShapeDtypeStruct((Np, DP), jnp.float32),
        grid=grid,
        in_specs=[
            pl.BlockSpec((tb, DP), lambda i: (i, 0)),
            pl.BlockSpec((L, DP, DP), const3, pipeline_mode=pl.Buffered(1)),
            pl.BlockSpec((L, 1, DP), const3, pipeline_mode=pl.Buffered(1)),
        ],
        out_specs=pl.BlockSpec((tb, DP), lambda i: (i, 0)),
        compiler_params=pltpu.CompilerParams(
            dimension_semantics=("parallel",),        # batch tiles: megacore-shardable
            vmem_limit_bytes=vmem_limit,
        ),
        cost_estimate=cost,
    )(slab, W, B)

    return out_p[:N, :out_dim]                        # strip batch + lane padding


# ----------------------------------------------------------------- params ---
def init_params(key, in_dims, out_dims, emb_size):
    in_dims2 = list(in_dims)
    in_dims2[0] *= 2
    out_dims_temp = list(out_dims)
    out_dims_temp[0] += in_dims2[-1]
    in_dims_temp = [in_dims[0] + emb_size] + list(in_dims[1:])
    in_dims_temp2 = [in_dims2[0] + emb_size] + list(in_dims2[1:])

    keys = iter(jax.random.split(key, 64))

    def lin(d_in, d_out):
        k1, k2 = jax.random.split(next(keys))
        std = np.sqrt(2.0 / (d_in + d_out))
        w = jax.random.normal(k1, (d_in, d_out), jnp.float32) * std
        b = jax.random.normal(k2, (d_out,), jnp.float32) * 0.001
        return w, b

    return {
        "emb": lin(emb_size, emb_size),
        "in_layers": [lin(a, b) for a, b in zip(in_dims_temp[:-1], in_dims_temp[1:])],
        "in_layers2": [lin(a, b) for a, b in zip(in_dims_temp2[:-1], in_dims_temp2[1:])],
        "out_layers": [lin(a, b) for a, b in zip(out_dims_temp[:-1], out_dims_temp[1:])],
    }


# -------------------------------------------------------------- reference ---
def reference_forward(params, x, timesteps, x_U, *, emb_size):
    x = x.astype(jnp.float32)
    x_U = x_U.reshape(x_U.shape[0], -1).astype(jnp.float32)
    temb = timestep_embedding(timesteps, emb_size)
    emb = temb @ jnp.asarray(params["emb"][0], jnp.float32) \
        + jnp.asarray(params["emb"][1], jnp.float32)
    h = jnp.concatenate([x, emb], axis=-1)
    for w, b in params["in_layers"]:
        h = jnp.tanh(h @ w + b)
    h_u = jnp.concatenate([x_U, emb], axis=-1)
    for w, b in params["in_layers2"]:
        h_u = jnp.tanh(h_u @ w + b)
    h = jnp.concatenate([h, h_u], axis=-1)
    n = len(params["out_layers"])
    for i, (w, b) in enumerate(params["out_layers"]):
        h = h @ w + b
        if i != n - 1:
            h = jnp.tanh(h)
    return h


# ------------------------------------------------------------------- main ---
if __name__ == "__main__":
    # module config: in_dims=[16, 48, 32], out_dims=[32, 64, 16]
    # (out_dims[0] == in_dims[-1], as asserted by the module)
    in_dims = [16, 48, 32]
    out_dims = [32, 64, 16]
    emb_size = 8
    N = 512          # two 256-row batch tiles -> 2 parallel grid steps (v7x megacore)

    key = jax.random.PRNGKey(0)
    kp, kx, kxu, kt = jax.random.split(key, 4)
    params = init_params(kp, in_dims, out_dims, emb_size)

    x = jax.random.normal(kx, (N, in_dims[0]), jnp.float32)
    x_U = jax.random.normal(kxu, (N, 2, in_dims[0]), jnp.float32)  # reshaped to [N, 2*D0]
    timesteps = jax.random.randint(kt, (N,), 0, 1000).astype(jnp.float32)

    ref = reference_forward(params, x, timesteps, x_U, emb_size=emb_size)

    # --- f32 MXU-operand path: exact module semantics ------------------------
    out = dnn_onehot_forward(params, x, timesteps, x_U, emb_size=emb_size,
                             tb=256, mxu_dtype=jnp.float32)
    out = jax.block_until_ready(out)
    assert out.shape == (N, out_dims[-1])
    np.testing.assert_allclose(np.asarray(out), np.asarray(ref), rtol=1e-4, atol=1e-4)

    # --- bf16 MXU-operand path (recommended on v5e/v6e/v7x; accum/tanh in f32)
    out_bf = dnn_onehot_forward(params, x, timesteps, x_U, emb_size=emb_size,
                                tb=256, mxu_dtype=jnp.bfloat16)
    out_bf = jax.block_until_ready(out_bf)
    np.testing.assert_allclose(np.asarray(out_bf), np.asarray(ref),
                               rtol=3e-2, atol=3e-2)

    print("KERNEL_OK")
</pallas_src>

<mosaic_0001>
module attributes {stable_mosaic.version = 11 : i64} {
  func.func @kernel(%arg0: i32, %arg1: memref<256x128xf32, #tpu.memory_space<vmem>>, %arg2: memref<6x128x128xf32, #tpu.memory_space<vmem>>, %arg3: memref<6x1x128xf32, #tpu.memory_space<vmem>>, %arg4: memref<256x128xf32, #tpu.memory_space<vmem>>) attributes {dimension_semantics = [#tpu.dimension_semantics<parallel>], iteration_bounds = array<i64: 2>, scalar_prefetch = 0 : i64, scratch_operands = 0 : i64, tpu.core_type = #tpu.core_type<tc>, window_params = [{transform_indices = @transform_0, window_bounds = array<i64: 256, 128>}, {pipeline_mode = #tpu.pipeline_mode<synchronous>, transform_indices = @transform_1, window_bounds = array<i64: 6, 128, 128>}, {pipeline_mode = #tpu.pipeline_mode<synchronous>, transform_indices = @transform_2, window_bounds = array<i64: 6, 1, 128>}, {transform_indices = @transform_3, window_bounds = array<i64: 256, 128>}]} {
    %c0 = arith.constant 0 : index
    %c0_0 = arith.constant 0 : index
    %0 = vector.load %arg1[%c0, %c0_0] : memref<256x128xf32, #tpu.memory_space<vmem>>, vector<256x128xf32>
    %c0_1 = arith.constant 0 : index
    %c0_2 = arith.constant 0 : index
    %c0_3 = arith.constant 0 : index
    %1 = vector.load %arg2[%c0_1, %c0_2, %c0_3] : memref<6x128x128xf32, #tpu.memory_space<vmem>>, vector<1x128x128xf32>
    %2 = vector.shape_cast %1 : vector<1x128x128xf32> to vector<128x128xf32>
    %cst = arith.constant dense<0.000000e+00> : vector<256x128xf32>
    %3 = tpu.matmul %0, %2, %cst {dimension_numbers = #tpu.dot_dimension_numbers<[1], [0], [0], [1], [0, 0, 1, 1], [], []>} : vector<256x128xf32>, vector<128x128xf32>, vector<256x128xf32> -> vector<256x128xf32>
    %c0_4 = arith.constant 0 : index
    %c0_5 = arith.constant 0 : index
    %c0_6 = arith.constant 0 : index
    %4 = vector.load %arg3[%c0_4, %c0_5, %c0_6] : memref<6x1x128xf32, #tpu.memory_space<vmem>>, vector<1x1x128xf32>
    %5 = vector.shape_cast %4 : vector<1x1x128xf32> to vector<1x128xf32>
    %6 = vector.broadcast %5 : vector<1x128xf32> to vector<256x128xf32>
    %7 = arith.addf %3, %6 : vector<256x128xf32>
    %8 = math.tanh %7 : vector<256x128xf32>
    %c1 = arith.constant 1 : index
    %c0_7 = arith.constant 0 : index
    %c0_8 = arith.constant 0 : index
    %9 = vector.load %arg2[%c1, %c0_7, %c0_8] : memref<6x128x128xf32, #tpu.memory_space<vmem>>, vector<1x128x128xf32>
    %10 = vector.shape_cast %9 : vector<1x128x128xf32> to vector<128x128xf32>
    %cst_9 = arith.constant dense<0.000000e+00> : vector<256x128xf32>
    %11 = tpu.matmul %8, %10, %cst_9 {dimension_numbers = #tpu.dot_dimension_numbers<[1], [0], [0], [1], [0, 0, 1, 1], [], []>} : vector<256x128xf32>, vector<128x128xf32>, vector<256x128xf32> -> vector<256x128xf32>
    %c1_10 = arith.constant 1 : index
    %c0_11 = arith.constant 0 : index
    %c0_12 = arith.constant 0 : index
    %12 = vector.load %arg3[%c1_10, %c0_11, %c0_12] : memref<6x1x128xf32, #tpu.memory_space<vmem>>, vector<1x1x128xf32>
    %13 = vector.shape_cast %12 : vector<1x1x128xf32> to vector<1x128xf32>
    %14 = vector.broadcast %13 : vector<1x128xf32> to vector<256x128xf32>
    %15 = arith.addf %11, %14 : vector<256x128xf32>
    %16 = math.tanh %15 : vector<256x128xf32>
    %c2 = arith.constant 2 : index
    %c0_13 = arith.constant 0 : index
    %c0_14 = arith.constant 0 : index
    %17 = vector.load %arg2[%c2, %c0_13, %c0_14] : memref<6x128x128xf32, #tpu.memory_space<vmem>>, vector<1x128x128xf32>
    %18 = vector.shape_cast %17 : vector<1x128x128xf32> to vector<128x128xf32>
    %cst_15 = arith.constant dense<0.000000e+00> : vector<256x128xf32>
    %19 = tpu.matmul %0, %18, %cst_15 {dimension_numbers = #tpu.dot_dimension_numbers<[1], [0], [0], [1], [0, 0, 1, 1], [], []>} : vector<256x128xf32>, vector<128x128xf32>, vector<256x128xf32> -> vector<256x128xf32>
    %c2_16 = arith.constant 2 : index
    %c0_17 = arith.constant 0 : index
    %c0_18 = arith.constant 0 : index
    %20 = vector.load %arg3[%c2_16, %c0_17, %c0_18] : memref<6x1x128xf32, #tpu.memory_space<vmem>>, vector<1x1x128xf32>
    %21 = vector.shape_cast %20 : vector<1x1x128xf32> to vector<1x128xf32>
    %22 = vector.broadcast %21 : vector<1x128xf32> to vector<256x128xf32>
    %23 = arith.addf %19, %22 : vector<256x128xf32>
    %24 = math.tanh %23 : vector<256x128xf32>
    %c3 = arith.constant 3 : index
    %c0_19 = arith.constant 0 : index
    %c0_20 = arith.constant 0 : index
    %25 = vector.load %arg2[%c3, %c0_19, %c0_20] : memref<6x128x128xf32, #tpu.memory_space<vmem>>, vector<1x128x128xf32>
    %26 = vector.shape_cast %25 : vector<1x128x128xf32> to vector<128x128xf32>
    %cst_21 = arith.constant dense<0.000000e+00> : vector<256x128xf32>
    %27 = tpu.matmul %24, %26, %cst_21 {dimension_numbers = #tpu.dot_dimension_numbers<[1], [0], [0], [1], [0, 0, 1, 1], [], []>} : vector<256x128xf32>, vector<128x128xf32>, vector<256x128xf32> -> vector<256x128xf32>
    %c3_22 = arith.constant 3 : index
    %c0_23 = arith.constant 0 : index
    %c0_24 = arith.constant 0 : index
    %28 = vector.load %arg3[%c3_22, %c0_23, %c0_24] : memref<6x1x128xf32, #tpu.memory_space<vmem>>, vector<1x1x128xf32>
    %29 = vector.shape_cast %28 : vector<1x1x128xf32> to vector<1x128xf32>
    %30 = vector.broadcast %29 : vector<1x128xf32> to vector<256x128xf32>
    %31 = arith.addf %27, %30 : vector<256x128xf32>
    %32 = math.tanh %31 : vector<256x128xf32>
    %c32_i32 = arith.constant 32 : i32
    %33 = tpu.dynamic_rotate %32 by %c32_i32 dim 1 : vector<256x128xf32>, i32 -> vector<256x128xf32>
    %34 = arith.addf %16, %33 : vector<256x128xf32>
    %c4 = arith.constant 4 : index
    %c0_25 = arith.constant 0 : index
    %c0_26 = arith.constant 0 : index
    %35 = vector.load %arg2[%c4, %c0_25, %c0_26] : memref<6x128x128xf32, #tpu.memory_space<vmem>>, vector<1x128x128xf32>
    %36 = vector.shape_cast %35 : vector<1x128x128xf32> to vector<128x128xf32>
    %cst_27 = arith.constant dense<0.000000e+00> : vector<256x128xf32>
    %37 = tpu.matmul %34, %36, %cst_27 {dimension_numbers = #tpu.dot_dimension_numbers<[1], [0], [0], [1], [0, 0, 1, 1], [], []>} : vector<256x128xf32>, vector<128x128xf32>, vector<256x128xf32> -> vector<256x128xf32>
    %c4_28 = arith.constant 4 : index
    %c0_29 = arith.constant 0 : index
    %c0_30 = arith.constant 0 : index
    %38 = vector.load %arg3[%c4_28, %c0_29, %c0_30] : memref<6x1x128xf32, #tpu.memory_space<vmem>>, vector<1x1x128xf32>
    %39 = vector.shape_cast %38 : vector<1x1x128xf32> to vector<1x128xf32>
    %40 = vector.broadcast %39 : vector<1x128xf32> to vector<256x128xf32>
    %41 = arith.addf %37, %40 : vector<256x128xf32>
    %42 = math.tanh %41 : vector<256x128xf32>
    %c5 = arith.constant 5 : index
    %c0_31 = arith.constant 0 : index
    %c0_32 = arith.constant 0 : index
    %43 = vector.load %arg2[%c5, %c0_31, %c0_32] : memref<6x128x128xf32, #tpu.memory_space<vmem>>, vector<1x128x128xf32>
    %44 = vector.shape_cast %43 : vector<1x128x128xf32> to vector<128x128xf32>
    %cst_33 = arith.constant dense<0.000000e+00> : vector<256x128xf32>
    %45 = tpu.matmul %42, %44, %cst_33 {dimension_numbers = #tpu.dot_dimension_numbers<[1], [0], [0], [1], [0, 0, 1, 1], [], []>} : vector<256x128xf32>, vector<128x128xf32>, vector<256x128xf32> -> vector<256x128xf32>
    %c5_34 = arith.constant 5 : index
    %c0_35 = arith.constant 0 : index
    %c0_36 = arith.constant 0 : index
    %46 = vector.load %arg3[%c5_34, %c0_35, %c0_36] : memref<6x1x128xf32, #tpu.memory_space<vmem>>, vector<1x1x128xf32>
    %47 = vector.shape_cast %46 : vector<1x1x128xf32> to vector<1x128xf32>
    %48 = vector.broadcast %47 : vector<1x128xf32> to vector<256x128xf32>
    %49 = arith.addf %45, %48 : vector<256x128xf32>
    %c0_37 = arith.constant 0 : index
    %c0_38 = arith.constant 0 : index
    %50 = vector.load %arg4[%c0_37, %c0_38] : memref<256x128xf32, #tpu.memory_space<vmem>>, vector<256x128xf32>
    tpu.vector_store %arg4[%c0_37, %c0_38], %49 {strides = array<i32>} : memref<256x128xf32, #tpu.memory_space<vmem>>, vector<256x128xf32>,
    return
  }
  func.func @transform_0(%arg0: i32) -> (i32, i32) {
    %c0_i32 = arith.constant 0 : i32
    %c0_i32_0 = arith.constant 0 : i32
    return %arg0, %c0_i32 : i32, i32
  }
  func.func @transform_1(%arg0: i32) -> (i32, i32, i32) {
    %c0_i32 = arith.constant 0 : i32
    %c0_i32_0 = arith.constant 0 : i32
    %c0_i32_1 = arith.constant 0 : i32
    %c0_i32_2 = arith.constant 0 : i32
    return %c0_i32, %c0_i32_0, %c0_i32_1 : i32, i32, i32
  }
  func.func @transform_2(%arg0: i32) -> (i32, i32, i32) {
    %c0_i32 = arith.constant 0 : i32
    %c0_i32_0 = arith.constant 0 : i32
    %c0_i32_1 = arith.constant 0 : i32
    %c0_i32_2 = arith.constant 0 : i32
    return %c0_i32, %c0_i32_0, %c0_i32_1 : i32, i32, i32
  }
  func.func @transform_3(%arg0: i32) -> (i32, i32) {
    %c0_i32 = arith.constant 0 : i32
    %c0_i32_0 = arith.constant 0 : i32
    return %arg0, %c0_i32 : i32, i32
  }
}

</mosaic_0001>

<llo_original>
// kernel: dnn_onehot_forward.1
$region0: #{dnn_onehot_forward.1}
  #allocation0 [shape = 'u32[]', space=smem, size = 0x4, offset = 0x4, fixed_abs, tag = 'smem constant byte address 0x4 - core index']
  #allocation1 [shape = 'u32[72,128]{1,0:T(1,128)}', space=vmem, size = 0x9000, scoped, tag = 'internal scratch']
  %s0 = inlined_call_operand.vmem [shape: f32[512,128], index: 0, kind: input, shape index: {}]
  %s1 = inlined_call_operand.vmem [shape: f32[6,128,128], index: 1, kind: input, shape index: {}]
  %s2 = inlined_call_operand.vmem [shape: f32[6,1,128], index: 2, kind: input, shape index: {}]
  %s3 = inlined_call_operand.vmem [shape: f32[512,128], index: 3, kind: output, shape index: {}]
  %s4 = sld [smem:[#allocation0]]
  $region45: #{dnn_onehot_forward.1} parent=0
    _
  %s6 = ssub.s32 1, %s4
  %s7 = scalar_select 0, %s6, %s4
  loop: start=0, step=1, limit=4
  $region2: #{dnn_onehot_forward.1} parent=0 // loop_pre_header
    _
  $region3: #{dnn_onehot_forward.1} parent=0 // loop_header
    %s9 = sphi 0, %s13
    %p10 = scmp.ge.s32.totalorder %s9, 4
    %s19 = sphi 0, %s21
    %s22 = sphi 0, %s19
    %s23 = sphi 0, %s22
    %s39 = sphi 0, %s23
    %s43 = sphi 0, %s43
    %s45 = sphi 0, %s43
    %s46 = sphi 0, %s45
    %s60 = sphi 0, %s46
    %s64 = sphi 0, %s64
    %s66 = sphi 0, %s64
    %s67 = sphi 0, %s66
    %s81 = sphi 0, %s67
    %s87 = sphi 0, %s89
    %s90 = sphi 0, %s87
    %s91 = sphi 0, %s90
    %s107 = sphi 0, %s91
  $region4: #{dnn_onehot_forward.1} parent=0 // loop_header_branch
    %12 = sbr.rel (%p10) target = $region8
  $region5: #{dnn_onehot_forward.1} parent=0 // loop_body
    %s14 = ssub.s32 %s9, 1
    %s15 = ssub.s32 %s9, 2
    %s16 = sadd.s32 %s9, 1
    %s17 = ssub.s32 %s9, %s16
    %p18 = scmp.eq.s32.totalorder %s17, 0
    %s20 = sadd.s32 %s19, 1
    %s21 = scalar_select %p18, %s19, %s20
    %p24 = pneg %p18
    %p25 = scmp.eq.s32.totalorder %s9, 1
    %p26 = por %p24, %p25
    %p27 = scmp.ne.s32.totalorder %s19, %s22
    %p28 = scmp.eq.s32.totalorder %s9, 0
    %p29 = por %p27, %p28
    %p30 = scmp.ne.s32.totalorder %s19, %s22
    %p31 = scmp.eq.s32.totalorder %s14, 1
    %p32 = por %p30, %p31
    %p33 = scmp.ne.s32.totalorder %s22, %s23
    %p34 = scmp.eq.s32.totalorder %s14, 0
    %p35 = por %p33, %p34
    %p36 = scmp.ne.s32.totalorder %s22, %s23
    %p37 = scmp.eq.s32.totalorder %s15, 1
    %p38 = por %p36, %p37
    %p40 = scmp.ne.s32.totalorder %s23, %s39
    %p41 = scmp.eq.s32.totalorder %s15, 0
    %p42 = por %p40, %p41
    %s44 = sadd.s32 %s43, 1
    %p47 = scmp.eq.s32.totalorder %s9, 1
    %p48 = scmp.ne.s32.totalorder %s43, %s45
    %p49 = scmp.eq.s32.totalorder %s9, 0
    %p50 = por %p48, %p49
    %p51 = scmp.ne.s32.totalorder %s43, %s45
    %p52 = scmp.eq.s32.totalorder %s14, 1
    %p53 = por %p51, %p52
    %p54 = scmp.ne.s32.totalorder %s45, %s46
    %p55 = scmp.eq.s32.totalorder %s14, 0
    %p56 = por %p54, %p55
    %p57 = scmp.ne.s32.totalorder %s45, %s46
    %p58 = scmp.eq.s32.totalorder %s15, 1
    %p59 = por %p57, %p58
    %p61 = scmp.ne.s32.totalorder %s46, %s60
    %p62 = scmp.eq.s32.totalorder %s15, 0
    %p63 = por %p61, %p62
    %s65 = sadd.s32 %s64, 1
    %p68 = scmp.eq.s32.totalorder %s9, 1
    %p69 = scmp.ne.s32.totalorder %s64, %s66
    %p70 = scmp.eq.s32.totalorder %s9, 0
    %p71 = por %p69, %p70
    %p72 = scmp.ne.s32.totalorder %s64, %s66
    %p73 = scmp.eq.s32.totalorder %s14, 1
    %p74 = por %p72, %p73
    %p75 = scmp.ne.s32.totalorder %s66, %s67
    %p76 = scmp.eq.s32.totalorder %s14, 0
    %p77 = por %p75, %p76
    %p78 = scmp.ne.s32.totalorder %s66, %s67
    %p79 = scmp.eq.s32.totalorder %s15, 1
    %p80 = por %p78, %p79
    %p82 = scmp.ne.s32.totalorder %s67, %s81
    %p83 = scmp.eq.s32.totalorder %s15, 0
    %p84 = por %p82, %p83
    %s85 = ssub.s32 %s9, %s16
    %p86 = scmp.eq.s32.totalorder %s85, 0
    %s88 = sadd.s32 %s87, 1
    %s89 = scalar_select %p86, %s87, %s88
    %p92 = pneg %p86
    %p93 = scmp.eq.s32.totalorder %s9, 1
    %p94 = por %p92, %p93
    %p95 = scmp.ne.s32.totalorder %s87, %s90
    %p96 = scmp.eq.s32.totalorder %s9, 0
    %p97 = por %p95, %p96
    %p98 = scmp.ne.s32.totalorder %s87, %s90
    %p99 = scmp.eq.s32.totalorder %s14, 1
    %p100 = por %p98, %p99
    %p101 = scmp.ne.s32.totalorder %s90, %s91
    %p102 = scmp.eq.s32.totalorder %s14, 0
    %p103 = por %p101, %p102
    %p104 = scmp.ne.s32.totalorder %s90, %s91
    %p105 = scmp.eq.s32.totalorder %s15, 1
    %p106 = por %p104, %p105
    %p108 = scmp.ne.s32.totalorder %s91, %s107
    %p109 = scmp.eq.s32.totalorder %s15, 0
    %p110 = por %p108, %p109
    %p111 = scmp.le.s32.totalorder 1, %s9
    %p112 = scmp.lt.s32.totalorder %s9, 3
    %p113 = pnand %p111, %p112
    %p114 = pneg %p113
    // Predicated region
    $region9: #{dnn_onehot_forward.1} parent=5 // pred_check
      _
    $region10: #{dnn_onehot_forward.1} parent=5 // pred_check_branch
      %116 = sbr.rel (%p113) target = $region12
    $region11: #{dnn_onehot_forward.1} parent=5 // pred_region
      %s117 = ssub.s32 %s9, 1
      // Predicated region
      $region13: #{dnn_onehot_forward.1} parent=11 // pred_check
        %p118 = pneg %p56
      $region14: #{dnn_onehot_forward.1} parent=11 // pred_check_branch
        %120 = sbr.rel (%p118) target = $region16
      $region15: #{dnn_onehot_forward.1} parent=11 // pred_region
        _
      $region16: #{dnn_onehot_forward.1} parent=11 // pred_fallthru
        _
      // Predicated region
      $region17: #{dnn_onehot_forward.1} parent=11 // pred_check
        %p121 = pneg %p77
      $region18: #{dnn_onehot_forward.1} parent=11 // pred_check_branch
        %123 = sbr.rel (%p121) target = $region20
      $region19: #{dnn_onehot_forward.1} parent=11 // pred_region
        _
      $region20: #{dnn_onehot_forward.1} parent=11 // pred_fallthru
        _
    $region12: #{dnn_onehot_forward.1} parent=5 // pred_fallthru
      _
    %p124 = scmp.lt.s32.totalorder %s9, 2
    // Predicated region
    $region21: #{dnn_onehot_forward.1} parent=5 // pred_check
      %p125 = pneg %p124
    $region22: #{dnn_onehot_forward.1} parent=5 // pred_check_branch
      %127 = sbr.rel (%p125) target = $region24
    $region23: #{dnn_onehot_forward.1} parent=5 // pred_region
      // Predicated region
      $region25: #{dnn_onehot_forward.1} parent=23 // pred_check
        %p128 = pneg %p29
      $region26: #{dnn_onehot_forward.1} parent=23 // pred_check_branch
        %130 = sbr.rel (%p128) target = $region28
      $region27: #{dnn_onehot_forward.1} parent=23 // pred_region
        %s131 = smul.u32 32, %s9
        %p132 = scmp.lt.s32.totalorder %s131, 63
        %s133 = scalar_select %p132, %s131, 63
        %s134 = smul.addr %s133, 8
        %s135 = scalar_lea.vmem %s0, %s134
        %s136 = smul.u32 32, %s9
      $region28: #{dnn_onehot_forward.1} parent=23 // pred_fallthru
        _
    $region24: #{dnn_onehot_forward.1} parent=5 // pred_fallthru
      _
    %p137 = scmp.le.s32.totalorder 1, %s9
    %p138 = scmp.lt.s32.totalorder %s9, 3
    %p139 = pnand %p137, %p138
    %p140 = pneg %p139
    // Predicated region
    $region29: #{dnn_onehot_forward.1} parent=5 // pred_check
      _
    $region30: #{dnn_onehot_forward.1} parent=5 // pred_check_branch
      %142 = sbr.rel (%p139) target = $region32
    $region31: #{dnn_onehot_forward.1} parent=5 // pred_region
      %s143 = ssub.s32 %s9, 1
      %s144 = smul.u32 32, %s14
      %p145 = scmp.lt.s32.totalorder %s144, 63
      %s146 = scalar_select %p145, %s144, 63
      %s147 = smul.addr %s146, 8
      %s148 = scalar_lea.vmem %s0, %s147
      %p149 = pneg %p35
      %p150 = pneg %p32
      %p151 = pneg %p56
      %p152 = pneg %p53
      %p153 = pneg %p77
      %p154 = pneg %p74
      %p155 = pneg %p103
      %p156 = pneg %p100
      %s157 = smul.u32 32, %s14
      %p158 = scmp.lt.s32.totalorder %s157, 63
      %s159 = scalar_select %p158, %s157, 63
      %s160 = smul.addr %s159, 8
      %s161 = scalar_lea.vmem %s3, %s160
      %s162 = smul.u32 32, %s14
      %p163 = scmp.lt.s32.totalorder %s162, 63
      %s164 = scalar_select %p163, %s162, 63
      %s165 = smul.addr %s164, 8
      %s166 = scalar_lea.vmem %s0, %s165
      %s167 = smul.u32 32, %s14
      %s168 = smul.u32 32, %s14
      %p169 = scmp.lt.s32.totalorder %s168, 63
      %s170 = scalar_select %p169, %s168, 63
      %s171 = smul.addr %s170, 8
      %s172 = scalar_lea.vmem %s3, %s171
      %s173 = smul.u32 32, %s14
      %v174 = vld [vmem:[%s166] sm:$0xff]
      %v175 = vld [vmem:[%s166 + $0x8] sm:$0xff]
      %v176 = vld [vmem:[%s166 + $0x10] sm:$0xff]
      %v177 = vld [vmem:[%s166 + $0x18] sm:$0xff]
      %v178 = vld [vmem:[%s166 + $0x20] sm:$0xff]
      %v179 = vld [vmem:[%s166 + $0x28] sm:$0xff]
      %v180 = vld [vmem:[%s166 + $0x30] sm:$0xff]
      %v181 = vld [vmem:[%s166 + $0x38] sm:$0xff]
      %v182 = vld [vmem:[%s166 + $0x40] sm:$0xff]
      %v183 = vld [vmem:[%s166 + $0x48] sm:$0xff]
      %v184 = vld [vmem:[%s166 + $0x50] sm:$0xff]
      %v185 = vld [vmem:[%s166 + $0x58] sm:$0xff]
      %v186 = vld [vmem:[%s166 + $0x60] sm:$0xff]
      %v187 = vld [vmem:[%s166 + $0x68] sm:$0xff]
      %v188 = vld [vmem:[%s166 + $0x70] sm:$0xff]
      %v189 = vld [vmem:[%s166 + $0x78] sm:$0xff]
      %v190 = vld [vmem:[%s166 + $0x80] sm:$0xff]
      %v191 = vld [vmem:[%s166 + $0x88] sm:$0xff]
      %v192 = vld [vmem:[%s166 + $0x90] sm:$0xff]
      %v193 = vld [vmem:[%s166 + $0x98] sm:$0xff]
      %v194 = vld [vmem:[%s166 + $0xa0] sm:$0xff]
      %v195 = vld [vmem:[%s166 + $0xa8] sm:$0xff]
      %v196 = vld [vmem:[%s166 + $0xb0] sm:$0xff]
      %v197 = vld [vmem:[%s166 + $0xb8] sm:$0xff]
      %v198 = vld [vmem:[%s166 + $0xc0] sm:$0xff]
      %v199 = vld [vmem:[%s166 + $0xc8] sm:$0xff]
      %v200 = vld [vmem:[%s166 + $0xd0] sm:$0xff]
      %v201 = vld [vmem:[%s166 + $0xd8] sm:$0xff]
      %v202 = vld [vmem:[%s166 + $0xe0] sm:$0xff]
      %v203 = vld [vmem:[%s166 + $0xe8] sm:$0xff]
      %v204 = vld [vmem:[%s166 + $0xf0] sm:$0xff]
      %v205 = vld [vmem:[%s166 + $0xf8] sm:$0xff]
      %v206 = vld [vmem:[%s1] sm:$0xff]
      %v207 = vld [vmem:[%s1 + $0x8] sm:$0xff]
      %v208 = vld [vmem:[%s1 + $0x10] sm:$0xff]
      %v209 = vld [vmem:[%s1 + $0x18] sm:$0xff]
      %v210 = vld [vmem:[%s1 + $0x20] sm:$0xff]
      %v211 = vld [vmem:[%s1 + $0x28] sm:$0xff]
      %v212 = vld [vmem:[%s1 + $0x30] sm:$0xff]
      %v213 = vld [vmem:[%s1 + $0x38] sm:$0xff]
      %v214 = vld [vmem:[%s1 + $0x40] sm:$0xff]
      %v215 = vld [vmem:[%s1 + $0x48] sm:$0xff]
      %v216 = vld [vmem:[%s1 + $0x50] sm:$0xff]
      %v217 = vld [vmem:[%s1 + $0x58] sm:$0xff]
      %v218 = vld [vmem:[%s1 + $0x60] sm:$0xff]
      %v219 = vld [vmem:[%s1 + $0x68] sm:$0xff]
      %v220 = vld [vmem:[%s1 + $0x70] sm:$0xff]
      %v221 = vld [vmem:[%s1 + $0x78] sm:$0xff]
      %v222 = vld [vmem:[%s2] sm:$0x1]
      %v224 = vperm.slane %v222, 0
      %226 = vmatpush.msra.mxu0 %v221
      %227 = vmatpush.msra.mxu0 %v220
      %228 = vmatpush.msra.mxu0 %v219
      %229 = vmatpush.msra.mxu0 %v218
      %230 = vmatpush.msra.mxu0 %v217
      %231 = vmatpush.msra.mxu0 %v216
      %232 = vmatpush.msra.mxu0 %v215
      %233 = vmatpush.msra.mxu0 %v214
      %234 = vmatpush.msra.mxu0 %v213
      %235 = vmatpush.msra.mxu0 %v212
      %236 = vmatpush.msra.mxu0 %v211
      %237 = vmatpush.msra.mxu0 %v210
      %238 = vmatpush.msra.mxu0 %v209
      %239 = vmatpush.msra.mxu0 %v208
      %240 = vmatpush.msra.mxu0 %v207
      %241 = vmatpush.msra.mxu0 %v206
      %242 = vmatmul.f32.gmra.mxu0 %v174
      %v243 = vpop.f32.mrf.mxu0
      %v244 = vadd.f32 %v224, %v243
      %245 = vmatmul.f32.gmra.mxu0 %v175
      %v246 = vpop.f32.mrf.mxu0
      %v247 = vadd.f32 %v224, %v246
      %248 = vmatmul.f32.gmra.mxu0 %v176
      %v249 = vpop.f32.mrf.mxu0
      %v250 = vadd.f32 %v224, %v249
      %251 = vmatmul.f32.gmra.mxu0 %v177
      %v252 = vpop.f32.mrf.mxu0
      %v253 = vadd.f32 %v224, %v252
      %254 = vmatmul.f32.gmra.mxu0 %v178
      %v255 = vpop.f32.mrf.mxu0
      %v256 = vadd.f32 %v224, %v255
      %257 = vmatmul.f32.gmra.mxu0 %v179
      %v258 = vpop.f32.mrf.mxu0
      %v259 = vadd.f32 %v224, %v258
      %260 = vmatmul.f32.gmra.mxu0 %v180
      %v261 = vpop.f32.mrf.mxu0
      %v262 = vadd.f32 %v224, %v261
      %263 = vmatmul.f32.gmra.mxu0 %v181
      %v264 = vpop.f32.mrf.mxu0
      %v265 = vadd.f32 %v224, %v264
      %266 = vmatmul.f32.gmra.mxu0 %v182
      %v267 = vpop.f32.mrf.mxu0
      %v268 = vadd.f32 %v224, %v267
      %269 = vmatmul.f32.gmra.mxu0 %v183
      %v270 = vpop.f32.mrf.mxu0
      %v271 = vadd.f32 %v224, %v270
      %272 = vmatmul.f32.gmra.mxu0 %v184
      %v273 = vpop.f32.mrf.mxu0
      %v274 = vadd.f32 %v224, %v273
      %275 = vmatmul.f32.gmra.mxu0 %v185
      %v276 = vpop.f32.mrf.mxu0
      %v277 = vadd.f32 %v224, %v276
      %278 = vmatmul.f32.gmra.mxu0 %v186
      %v279 = vpop.f32.mrf.mxu0
      %v280 = vadd.f32 %v224, %v279
      %281 = vmatmul.f32.gmra.mxu0 %v187
      %v282 = vpop.f32.mrf.mxu0
      %v283 = vadd.f32 %v224, %v282
      %284 = vmatmul.f32.gmra.mxu0 %v188
      %v285 = vpop.f32.mrf.mxu0
      %v286 = vadd.f32 %v224, %v285
      %287 = vmatmul.f32.gmra.mxu0 %v189
      %v288 = vpop.f32.mrf.mxu0
      %v289 = vadd.f32 %v224, %v288
      %290 = vmatmul.f32.gmra.mxu0 %v190
      %v291 = vpop.f32.mrf.mxu0
      %v292 = vadd.f32 %v224, %v291
      %293 = vmatmul.f32.gmra.mxu0 %v191
      %v294 = vpop.f32.mrf.mxu0
      %v295 = vadd.f32 %v224, %v294
      %296 = vmatmul.f32.gmra.mxu0 %v192
      %v297 = vpop.f32.mrf.mxu0
      %v298 = vadd.f32 %v224, %v297
      %299 = vmatmul.f32.gmra.mxu0 %v193
      %v300 = vpop.f32.mrf.mxu0
      %v301 = vadd.f32 %v224, %v300
      %302 = vmatmul.f32.gmra.mxu0 %v194
      %v303 = vpop.f32.mrf.mxu0
      %v304 = vadd.f32 %v224, %v303
      %305 = vmatmul.f32.gmra.mxu0 %v195
      %v306 = vpop.f32.mrf.mxu0
      %v307 = vadd.f32 %v224, %v306
      %308 = vmatmul.f32.gmra.mxu0 %v196
      %v309 = vpop.f32.mrf.mxu0
      %v310 = vadd.f32 %v224, %v309
      %311 = vmatmul.f32.gmra.mxu0 %v197
      %v312 = vpop.f32.mrf.mxu0
      %v313 = vadd.f32 %v224, %v312
      %314 = vmatmul.f32.gmra.mxu0 %v198
      %v315 = vpop.f32.mrf.mxu0
      %v316 = vadd.f32 %v224, %v315
      %317 = vmatmul.f32.gmra.mxu0 %v199
      %v318 = vpop.f32.mrf.mxu0
      %v319 = vadd.f32 %v224, %v318
      %320 = vmatmul.f32.gmra.mxu0 %v200
      %v321 = vpop.f32.mrf.mxu0
      %v322 = vadd.f32 %v224, %v321
      %323 = vmatmul.f32.gmra.mxu0 %v201
      %v324 = vpop.f32.mrf.mxu0
      %v325 = vadd.f32 %v224, %v324
      %326 = vmatmul.f32.gmra.mxu0 %v202
      %v327 = vpop.f32.mrf.mxu0
      %v328 = vadd.f32 %v224, %v327
      %329 = vmatmul.f32.gmra.mxu0 %v203
      %v330 = vpop.f32.mrf.mxu0
      %v331 = vadd.f32 %v224, %v330
      %332 = vmatmul.f32.gmra.mxu0 %v204
      %v333 = vpop.f32.mrf.mxu0
      %v334 = vadd.f32 %v224, %v333
      %335 = vmatmul.f32.gmra.mxu0 %v205
      %v336 = vpop.f32.mrf.mxu0
      %v337 = vadd.f32 %v224, %v336
      %338 = vdwg.mxu0
      %v339 = vtanh.pop %v244
      %v340 = vtanh.pop %v247
      %v341 = vtanh.pop %v250
      %v342 = vtanh.pop %v253
      %v343 = vtanh.pop %v256
      %v344 = vtanh.pop %v259
      %v345 = vtanh.pop %v262
      %v346 = vtanh.pop %v265
      %v347 = vtanh.pop %v268
      %v348 = vtanh.pop %v271
      %v349 = vtanh.pop %v274
      %v350 = vtanh.pop %v277
      %v351 = vtanh.pop %v280
      %v352 = vtanh.pop %v283
      %v353 = vtanh.pop %v286
      %v354 = vtanh.pop %v289
      %v355 = vtanh.pop %v292
      %v356 = vtanh.pop %v295
      %v357 = vtanh.pop %v298
      %v358 = vtanh.pop %v301
      %v359 = vtanh.pop %v304
      %v360 = vtanh.pop %v307
      %v361 = vtanh.pop %v310
      %v362 = vtanh.pop %v313
      %v363 = vtanh.pop %v316
      %v364 = vtanh.pop %v319
      %v365 = vtanh.pop %v322
      %v366 = vtanh.pop %v325
      %v367 = vtanh.pop %v328
      %v368 = vtanh.pop %v331
      %v369 = vtanh.pop %v334
      %v370 = vtanh.pop %v337
      %s371 = scalar_lea.vmem %s1, 128
      %v372 = vld [vmem:[%s371] sm:$0xff]
      %v373 = vld [vmem:[%s371 + $0x8] sm:$0xff]
      %v374 = vld [vmem:[%s371 + $0x10] sm:$0xff]
      %v375 = vld [vmem:[%s371 + $0x18] sm:$0xff]
      %v376 = vld [vmem:[%s371 + $0x20] sm:$0xff]
      %v377 = vld [vmem:[%s371 + $0x28] sm:$0xff]
      %v378 = vld [vmem:[%s371 + $0x30] sm:$0xff]
      %v379 = vld [vmem:[%s371 + $0x38] sm:$0xff]
      %v380 = vld [vmem:[%s371 + $0x40] sm:$0xff]
      %v381 = vld [vmem:[%s371 + $0x48] sm:$0xff]
      %v382 = vld [vmem:[%s371 + $0x50] sm:$0xff]
      %v383 = vld [vmem:[%s371 + $0x58] sm:$0xff]
      %v384 = vld [vmem:[%s371 + $0x60] sm:$0xff]
      %v385 = vld [vmem:[%s371 + $0x68] sm:$0xff]
      %v386 = vld [vmem:[%s371 + $0x70] sm:$0xff]
      %v387 = vld [vmem:[%s371 + $0x78] sm:$0xff]
      %s388 = scalar_lea.vmem %s2, 1
      %v389 = vld [vmem:[%s388] sm:$0x1]
      %v391 = vperm.slane %v389, 0
      %393 = vmatpush.msra.mxu0 %v387
      %394 = vmatpush.msra.mxu0 %v386
      %395 = vmatpush.msra.mxu0 %v385
      %396 = vmatpush.msra.mxu0 %v384
      %397 = vmatpush.msra.mxu0 %v383
      %398 = vmatpush.msra.mxu0 %v382
      %399 = vmatpush.msra.mxu0 %v381
      %400 = vmatpush.msra.mxu0 %v380
      %401 = vmatpush.msra.mxu0 %v379
      %402 = vmatpush.msra.mxu0 %v378
      %403 = vmatpush.msra.mxu0 %v377
      %404 = vmatpush.msra.mxu0 %v376
      %405 = vmatpush.msra.mxu0 %v375
      %406 = vmatpush.msra.mxu0 %v374
      %407 = vmatpush.msra.mxu0 %v373
      %408 = vmatpush.msra.mxu0 %v372
      %409 = vmatmul.f32.gmra.mxu0 %v339
      %v410 = vpop.f32.mrf.mxu0
      %v411 = vadd.f32 %v391, %v410
      %412 = vmatmul.f32.gmra.mxu0 %v340
      %v413 = vpop.f32.mrf.mxu0
      %v414 = vadd.f32 %v391, %v413
      %415 = vmatmul.f32.gmra.mxu0 %v341
      %v416 = vpop.f32.mrf.mxu0
      %v417 = vadd.f32 %v391, %v416
      %418 = vmatmul.f32.gmra.mxu0 %v342
      %v419 = vpop.f32.mrf.mxu0
      %v420 = vadd.f32 %v391, %v419
      %421 = vmatmul.f32.gmra.mxu0 %v343
      %v422 = vpop.f32.mrf.mxu0
      %v423 = vadd.f32 %v391, %v422
      %424 = vmatmul.f32.gmra.mxu0 %v344
      %v425 = vpop.f32.mrf.mxu0
      %v426 = vadd.f32 %v391, %v425
      %427 = vmatmul.f32.gmra.mxu0 %v345
      %v428 = vpop.f32.mrf.mxu0
      %v429 = vadd.f32 %v391, %v428
      %430 = vmatmul.f32.gmra.mxu0 %v346
      %v431 = vpop.f32.mrf.mxu0
      %v432 = vadd.f32 %v391, %v431
      %433 = vmatmul.f32.gmra.mxu0 %v347
      %v434 = vpop.f32.mrf.mxu0
      %v435 = vadd.f32 %v391, %v434
      %436 = vmatmul.f32.gmra.mxu0 %v348
      %v437 = vpop.f32.mrf.mxu0
      %v438 = vadd.f32 %v391, %v437
      %439 = vmatmul.f32.gmra.mxu0 %v349
      %v440 = vpop.f32.mrf.mxu0
      %v441 = vadd.f32 %v391, %v440
      %442 = vmatmul.f32.gmra.mxu0 %v350
      %v443 = vpop.f32.mrf.mxu0
      %v444 = vadd.f32 %v391, %v443
      %445 = vmatmul.f32.gmra.mxu0 %v351
      %v446 = vpop.f32.mrf.mxu0
      %v447 = vadd.f32 %v391, %v446
      %448 = vmatmul.f32.gmra.mxu0 %v352
      %v449 = vpop.f32.mrf.mxu0
      %v450 = vadd.f32 %v391, %v449
      %451 = vmatmul.f32.gmra.mxu0 %v353
      %v452 = vpop.f32.mrf.mxu0
      %v453 = vadd.f32 %v391, %v452
      %454 = vmatmul.f32.gmra.mxu0 %v354
      %v455 = vpop.f32.mrf.mxu0
      %v456 = vadd.f32 %v391, %v455
      %457 = vmatmul.f32.gmra.mxu0 %v355
      %v458 = vpop.f32.mrf.mxu0
      %v459 = vadd.f32 %v391, %v458
      %460 = vmatmul.f32.gmra.mxu0 %v356
      %v461 = vpop.f32.mrf.mxu0
      %v462 = vadd.f32 %v391, %v461
      %463 = vmatmul.f32.gmra.mxu0 %v357
      %v464 = vpop.f32.mrf.mxu0
      %v465 = vadd.f32 %v391, %v464
      %466 = vmatmul.f32.gmra.mxu0 %v358
      %v467 = vpop.f32.mrf.mxu0
      %v468 = vadd.f32 %v391, %v467
      %469 = vmatmul.f32.gmra.mxu0 %v359
      %v470 = vpop.f32.mrf.mxu0
      %v471 = vadd.f32 %v391, %v470
      %472 = vmatmul.f32.gmra.mxu0 %v360
      %v473 = vpop.f32.mrf.mxu0
      %v474 = vadd.f32 %v391, %v473
      %475 = vmatmul.f32.gmra.mxu0 %v361
      %v476 = vpop.f32.mrf.mxu0
      %v477 = vadd.f32 %v391, %v476
      %478 = vmatmul.f32.gmra.mxu0 %v362
      %v479 = vpop.f32.mrf.mxu0
      %v480 = vadd.f32 %v391, %v479
      %481 = vmatmul.f32.gmra.mxu0 %v363
      %v482 = vpop.f32.mrf.mxu0
      %v483 = vadd.f32 %v391, %v482
      %484 = vmatmul.f32.gmra.mxu0 %v364
      %v485 = vpop.f32.mrf.mxu0
      %v486 = vadd.f32 %v391, %v485
      %487 = vmatmul.f32.gmra.mxu0 %v365
      %v488 = vpop.f32.mrf.mxu0
      %v489 = vadd.f32 %v391, %v488
      %490 = vmatmul.f32.gmra.mxu0 %v366
      %v491 = vpop.f32.mrf.mxu0
      %v492 = vadd.f32 %v391, %v491
      %493 = vmatmul.f32.gmra.mxu0 %v367
      %v494 = vpop.f32.mrf.mxu0
      %v495 = vadd.f32 %v391, %v494
      %496 = vmatmul.f32.gmra.mxu0 %v368
      %v497 = vpop.f32.mrf.mxu0
      %v498 = vadd.f32 %v391, %v497
      %499 = vmatmul.f32.gmra.mxu0 %v369
      %v500 = vpop.f32.mrf.mxu0
      %v501 = vadd.f32 %v391, %v500
      %502 = vmatmul.f32.gmra.mxu0 %v370
      %v503 = vpop.f32.mrf.mxu0
      %v504 = vadd.f32 %v391, %v503
      %505 = vdwg.mxu0
      %v506 = vtanh.pop %v411
      %v507 = vtanh.pop %v414
      %v508 = vtanh.pop %v417
      %v509 = vtanh.pop %v420
      %v510 = vtanh.pop %v423
      %v511 = vtanh.pop %v426
      %v512 = vtanh.pop %v429
      %v513 = vtanh.pop %v432
      %v514 = vtanh.pop %v435
      %v515 = vtanh.pop %v438
      %v516 = vtanh.pop %v441
      %v517 = vtanh.pop %v444
      %v518 = vtanh.pop %v447
      %v519 = vtanh.pop %v450
      %v520 = vtanh.pop %v453
      %v521 = vtanh.pop %v456
      %v522 = vtanh.pop %v459
      %v523 = vtanh.pop %v462
      %v524 = vtanh.pop %v465
      %v525 = vtanh.pop %v468
      %v526 = vtanh.pop %v471
      %v527 = vtanh.pop %v474
      %v528 = vtanh.pop %v477
      %v529 = vtanh.pop %v480
      %v530 = vtanh.pop %v483
      %v531 = vtanh.pop %v486
      %v532 = vtanh.pop %v489
      %v533 = vtanh.pop %v492
      %v534 = vtanh.pop %v495
      %v535 = vtanh.pop %v498
      %v536 = vtanh.pop %v501
      %v537 = vtanh.pop %v504
      %s538 = scalar_lea.vmem %s1, 256
      %v539 = vld [vmem:[%s538] sm:$0xff]
      %v540 = vld [vmem:[%s538 + $0x8] sm:$0xff]
      %v541 = vld [vmem:[%s538 + $0x10] sm:$0xff]
      %v542 = vld [vmem:[%s538 + $0x18] sm:$0xff]
      %v543 = vld [vmem:[%s538 + $0x20] sm:$0xff]
      %v544 = vld [vmem:[%s538 + $0x28] sm:$0xff]
      %v545 = vld [vmem:[%s538 + $0x30] sm:$0xff]
      %v546 = vld [vmem:[%s538 + $0x38] sm:$0xff]
      %v547 = vld [vmem:[%s538 + $0x40] sm:$0xff]
      %v548 = vld [vmem:[%s538 + $0x48] sm:$0xff]
      %v549 = vld [vmem:[%s538 + $0x50] sm:$0xff]
      %v550 = vld [vmem:[%s538 + $0x58] sm:$0xff]
      %v551 = vld [vmem:[%s538 + $0x60] sm:$0xff]
      %v552 = vld [vmem:[%s538 + $0x68] sm:$0xff]
      %v553 = vld [vmem:[%s538 + $0x70] sm:$0xff]
      %v554 = vld [vmem:[%s538 + $0x78] sm:$0xff]
      %s555 = scalar_lea.vmem %s2, 2
      %v556 = vld [vmem:[%s555] sm:$0x1]
      %v558 = vperm.slane %v556, 0
      %560 = vmatpush.msra.mxu0 %v554
      %561 = vmatpush.msra.mxu0 %v553
      %562 = vmatpush.msra.mxu0 %v552
      %563 = vmatpush.msra.mxu0 %v551
      %564 = vmatpush.msra.mxu0 %v550
      %565 = vmatpush.msra.mxu0 %v549
      %566 = vmatpush.msra.mxu0 %v548
      %567 = vmatpush.msra.mxu0 %v547
      %568 = vmatpush.msra.mxu0 %v546
      %569 = vmatpush.msra.mxu0 %v545
      %570 = vmatpush.msra.mxu0 %v544
      %571 = vmatpush.msra.mxu0 %v543
      %572 = vmatpush.msra.mxu0 %v542
      %573 = vmatpush.msra.mxu0 %v541
      %574 = vmatpush.msra.mxu0 %v540
      %575 = vmatpush.msra.mxu0 %v539
      %576 = vmatmul.f32.gmra.mxu0 %v174
      %v577 = vpop.f32.mrf.mxu0
      %v578 = vadd.f32 %v558, %v577
      %579 = vmatmul.f32.gmra.mxu0 %v175
      %v580 = vpop.f32.mrf.mxu0
      %v581 = vadd.f32 %v558, %v580
      %582 = vmatmul.f32.gmra.mxu0 %v176
      %v583 = vpop.f32.mrf.mxu0
      %v584 = vadd.f32 %v558, %v583
      %585 = vmatmul.f32.gmra.mxu0 %v177
      %v586 = vpop.f32.mrf.mxu0
      %v587 = vadd.f32 %v558, %v586
      %588 = vmatmul.f32.gmra.mxu0 %v178
      %v589 = vpop.f32.mrf.mxu0
      %v590 = vadd.f32 %v558, %v589
      %591 = vmatmul.f32.gmra.mxu0 %v179
      %v592 = vpop.f32.mrf.mxu0
      %v593 = vadd.f32 %v558, %v592
      %594 = vmatmul.f32.gmra.mxu0 %v180
      %v595 = vpop.f32.mrf.mxu0
      %v596 = vadd.f32 %v558, %v595
      %597 = vmatmul.f32.gmra.mxu0 %v181
      %v598 = vpop.f32.mrf.mxu0
      %v599 = vadd.f32 %v558, %v598
      %600 = vmatmul.f32.gmra.mxu0 %v182
      %v601 = vpop.f32.mrf.mxu0
      %v602 = vadd.f32 %v558, %v601
      %603 = vmatmul.f32.gmra.mxu0 %v183
      %v604 = vpop.f32.mrf.mxu0
      %v605 = vadd.f32 %v558, %v604
      %606 = vmatmul.f32.gmra.mxu0 %v184
      %v607 = vpop.f32.mrf.mxu0
      %v608 = vadd.f32 %v558, %v607
      %609 = vmatmul.f32.gmra.mxu0 %v185
      %v610 = vpop.f32.mrf.mxu0
      %v611 = vadd.f32 %v558, %v610
      %612 = vmatmul.f32.gmra.mxu0 %v186
      %v613 = vpop.f32.mrf.mxu0
      %v614 = vadd.f32 %v558, %v613
      %615 = vmatmul.f32.gmra.mxu0 %v187
      %v616 = vpop.f32.mrf.mxu0
      %v617 = vadd.f32 %v558, %v616
      %618 = vmatmul.f32.gmra.mxu0 %v188
      %v619 = vpop.f32.mrf.mxu0
      %v620 = vadd.f32 %v558, %v619
      %621 = vmatmul.f32.gmra.mxu0 %v189
      %v622 = vpop.f32.mrf.mxu0
      %v623 = vadd.f32 %v558, %v622
      %624 = vmatmul.f32.gmra.mxu0 %v190
      %v625 = vpop.f32.mrf.mxu0
      %v626 = vadd.f32 %v558, %v625
      %627 = vmatmul.f32.gmra.mxu0 %v191
      %v628 = vpop.f32.mrf.mxu0
      %v629 = vadd.f32 %v558, %v628
      %630 = vmatmul.f32.gmra.mxu0 %v192
      %v631 = vpop.f32.mrf.mxu0
      %v632 = vadd.f32 %v558, %v631
      %633 = vmatmul.f32.gmra.mxu0 %v193
      %v634 = vpop.f32.mrf.mxu0
      %v635 = vadd.f32 %v558, %v634
      %636 = vmatmul.f32.gmra.mxu0 %v194
      %v637 = vpop.f32.mrf.mxu0
      %v638 = vadd.f32 %v558, %v637
      %639 = vmatmul.f32.gmra.mxu0 %v195
      %v640 = vpop.f32.mrf.mxu0
      %v641 = vadd.f32 %v558, %v640
      %642 = vmatmul.f32.gmra.mxu0 %v196
      %v643 = vpop.f32.mrf.mxu0
      %v644 = vadd.f32 %v558, %v643
      %645 = vmatmul.f32.gmra.mxu0 %v197
      %v646 = vpop.f32.mrf.mxu0
      %v647 = vadd.f32 %v558, %v646
      %648 = vmatmul.f32.gmra.mxu0 %v198
      %v649 = vpop.f32.mrf.mxu0
      %v650 = vadd.f32 %v558, %v649
      %651 = vmatmul.f32.gmra.mxu0 %v199
      %v652 = vpop.f32.mrf.mxu0
      %v653 = vadd.f32 %v558, %v652
      %654 = vmatmul.f32.gmra.mxu0 %v200
      %v655 = vpop.f32.mrf.mxu0
      %v656 = vadd.f32 %v558, %v655
      %657 = vmatmul.f32.gmra.mxu0 %v201
      %v658 = vpop.f32.mrf.mxu0
      %v659 = vadd.f32 %v558, %v658
      %660 = vmatmul.f32.gmra.mxu0 %v202
      %v661 = vpop.f32.mrf.mxu0
      %v662 = vadd.f32 %v558, %v661
      %663 = vmatmul.f32.gmra.mxu0 %v203
      %v664 = vpop.f32.mrf.mxu0
      %v665 = vadd.f32 %v558, %v664
      %666 = vmatmul.f32.gmra.mxu0 %v204
      %v667 = vpop.f32.mrf.mxu0
      %v668 = vadd.f32 %v558, %v667
      %669 = vmatmul.f32.gmra.mxu0 %v205
      %v670 = vpop.f32.mrf.mxu0
      %v671 = vadd.f32 %v558, %v670
      %672 = vdwg.mxu0
      %v673 = vtanh.pop %v578
      %v674 = vtanh.pop %v581
      %v675 = vtanh.pop %v584
      %v676 = vtanh.pop %v587
      %v677 = vtanh.pop %v590
      %v678 = vtanh.pop %v593
      %v679 = vtanh.pop %v596
      %v680 = vtanh.pop %v599
      %v681 = vtanh.pop %v602
      %v682 = vtanh.pop %v605
      %v683 = vtanh.pop %v608
      %v684 = vtanh.pop %v611
      %v685 = vtanh.pop %v614
      %v686 = vtanh.pop %v617
      %v687 = vtanh.pop %v620
      %v688 = vtanh.pop %v623
      %v689 = vtanh.pop %v626
      %v690 = vtanh.pop %v629
      %v691 = vtanh.pop %v632
      %v692 = vtanh.pop %v635
      %v693 = vtanh.pop %v638
      %v694 = vtanh.pop %v641
      %v695 = vtanh.pop %v644
      %v696 = vtanh.pop %v647
      %v697 = vtanh.pop %v650
      %v698 = vtanh.pop %v653
      %v699 = vtanh.pop %v656
      %v700 = vtanh.pop %v659
      %v701 = vtanh.pop %v662
      %v702 = vtanh.pop %v665
      %v703 = vtanh.pop %v668
      %v704 = vtanh.pop %v671
      %s705 = scalar_lea.vmem %s1, 384
      %v706 = vld [vmem:[%s705] sm:$0xff]
      %v707 = vld [vmem:[%s705 + $0x8] sm:$0xff]
      %v708 = vld [vmem:[%s705 + $0x10] sm:$0xff]
      %v709 = vld [vmem:[%s705 + $0x18] sm:$0xff]
      %v710 = vld [vmem:[%s705 + $0x20] sm:$0xff]
      %v711 = vld [vmem:[%s705 + $0x28] sm:$0xff]
      %v712 = vld [vmem:[%s705 + $0x30] sm:$0xff]
      %v713 = vld [vmem:[%s705 + $0x38] sm:$0xff]
      %v714 = vld [vmem:[%s705 + $0x40] sm:$0xff]
      %v715 = vld [vmem:[%s705 + $0x48] sm:$0xff]
      %v716 = vld [vmem:[%s705 + $0x50] sm:$0xff]
      %v717 = vld [vmem:[%s705 + $0x58] sm:$0xff]
      %v718 = vld [vmem:[%s705 + $0x60] sm:$0xff]
      %v719 = vld [vmem:[%s705 + $0x68] sm:$0xff]
      %v720 = vld [vmem:[%s705 + $0x70] sm:$0xff]
      %v721 = vld [vmem:[%s705 + $0x78] sm:$0xff]
      %s722 = scalar_lea.vmem %s2, 3
      %v723 = vld [vmem:[%s722] sm:$0x1]
      %v725 = vperm.slane %v723, 0
      %727 = vmatpush.msra.mxu0 %v721
      %728 = vmatpush.msra.mxu0 %v720
      %729 = vmatpush.msra.mxu0 %v719
      %730 = vmatpush.msra.mxu0 %v718
      %731 = vmatpush.msra.mxu0 %v717
      %732 = vmatpush.msra.mxu0 %v716
      %733 = vmatpush.msra.mxu0 %v715
      %734 = vmatpush.msra.mxu0 %v714
      %735 = vmatpush.msra.mxu0 %v713
      %736 = vmatpush.msra.mxu0 %v712
      %737 = vmatpush.msra.mxu0 %v711
      %738 = vmatpush.msra.mxu0 %v710
      %739 = vmatpush.msra.mxu0 %v709
      %740 = vmatpush.msra.mxu0 %v708
      %741 = vmatpush.msra.mxu0 %v707
      %742 = vmatpush.msra.mxu0 %v706
      %743 = vmatmul.f32.gmra.mxu0 %v673
      %v744 = vpop.f32.mrf.mxu0
      %v745 = vadd.f32 %v725, %v744
      %746 = vmatmul.f32.gmra.mxu0 %v674
      %v747 = vpop.f32.mrf.mxu0
      %v748 = vadd.f32 %v725, %v747
      %749 = vmatmul.f32.gmra.mxu0 %v675
      %v750 = vpop.f32.mrf.mxu0
      %v751 = vadd.f32 %v725, %v750
      %752 = vmatmul.f32.gmra.mxu0 %v676
      %v753 = vpop.f32.mrf.mxu0
      %v754 = vadd.f32 %v725, %v753
      %755 = vmatmul.f32.gmra.mxu0 %v677
      %v756 = vpop.f32.mrf.mxu0
      %v757 = vadd.f32 %v725, %v756
      %758 = vmatmul.f32.gmra.mxu0 %v678
      %v759 = vpop.f32.mrf.mxu0
      %v760 = vadd.f32 %v725, %v759
      %761 = vmatmul.f32.gmra.mxu0 %v679
      %v762 = vpop.f32.mrf.mxu0
      %v763 = vadd.f32 %v725, %v762
      %764 = vmatmul.f32.gmra.mxu0 %v680
      %v765 = vpop.f32.mrf.mxu0
      %v766 = vadd.f32 %v725, %v765
      %767 = vmatmul.f32.gmra.mxu0 %v681
      %v768 = vpop.f32.mrf.mxu0
      %v769 = vadd.f32 %v725, %v768
      %770 = vmatmul.f32.gmra.mxu0 %v682
      %v771 = vpop.f32.mrf.mxu0
      %v772 = vadd.f32 %v725, %v771
      %773 = vmatmul.f32.gmra.mxu0 %v683
      %v774 = vpop.f32.mrf.mxu0
      %v775 = vadd.f32 %v725, %v774
      %776 = vmatmul.f32.gmra.mxu0 %v684
      %v777 = vpop.f32.mrf.mxu0
      %v778 = vadd.f32 %v725, %v777
      %779 = vmatmul.f32.gmra.mxu0 %v685
      %v780 = vpop.f32.mrf.mxu0
      %v781 = vadd.f32 %v725, %v780
      %782 = vmatmul.f32.gmra.mxu0 %v686
      %v783 = vpop.f32.mrf.mxu0
      %v784 = vadd.f32 %v725, %v783
      %785 = vmatmul.f32.gmra.mxu0 %v687
      %v786 = vpop.f32.mrf.mxu0
      %v787 = vadd.f32 %v725, %v786
      %788 = vmatmul.f32.gmra.mxu0 %v688
      %v789 = vpop.f32.mrf.mxu0
      %v790 = vadd.f32 %v725, %v789
      %791 = vmatmul.f32.gmra.mxu0 %v689
      %v792 = vpop.f32.mrf.mxu0
      %v793 = vadd.f32 %v725, %v792
      %794 = vmatmul.f32.gmra.mxu0 %v690
      %v795 = vpop.f32.mrf.mxu0
      %v796 = vadd.f32 %v725, %v795
      %797 = vmatmul.f32.gmra.mxu0 %v691
      %v798 = vpop.f32.mrf.mxu0
      %v799 = vadd.f32 %v725, %v798
      %800 = vmatmul.f32.gmra.mxu0 %v692
      %v801 = vpop.f32.mrf.mxu0
      %v802 = vadd.f32 %v725, %v801
      %803 = vmatmul.f32.gmra.mxu0 %v693
      %v804 = vpop.f32.mrf.mxu0
      %v805 = vadd.f32 %v725, %v804
      %806 = vmatmul.f32.gmra.mxu0 %v694
      %v807 = vpop.f32.mrf.mxu0
      %v808 = vadd.f32 %v725, %v807
      %809 = vmatmul.f32.gmra.mxu0 %v695
      %v810 = vpop.f32.mrf.mxu0
      %v811 = vadd.f32 %v725, %v810
      %812 = vmatmul.f32.gmra.mxu0 %v696
      %v813 = vpop.f32.mrf.mxu0
      %v814 = vadd.f32 %v725, %v813
      %815 = vmatmul.f32.gmra.mxu0 %v697
      %v816 = vpop.f32.mrf.mxu0
      %v817 = vadd.f32 %v725, %v816
      %818 = vmatmul.f32.gmra.mxu0 %v698
      %v819 = vpop.f32.mrf.mxu0
      %v820 = vadd.f32 %v725, %v819
      %821 = vmatmul.f32.gmra.mxu0 %v699
      %v822 = vpop.f32.mrf.mxu0
      %v823 = vadd.f32 %v725, %v822
      %824 = vmatmul.f32.gmra.mxu0 %v700
      %v825 = vpop.f32.mrf.mxu0
      %v826 = vadd.f32 %v725, %v825
      %827 = vmatmul.f32.gmra.mxu0 %v701
      %v828 = vpop.f32.mrf.mxu0
      %v829 = vadd.f32 %v725, %v828
      %830 = vmatmul.f32.gmra.mxu0 %v702
      %v831 = vpop.f32.mrf.mxu0
      %v832 = vadd.f32 %v725, %v831
      %833 = vmatmul.f32.gmra.mxu0 %v703
      %v834 = vpop.f32.mrf.mxu0
      %v835 = vadd.f32 %v725, %v834
      %836 = vmatmul.f32.gmra.mxu0 %v704
      %v837 = vpop.f32.mrf.mxu0
      %v838 = vadd.f32 %v725, %v837
      %839 = vdwg.mxu0
      %v840 = vtanh.pop %v745
      %v841 = vtanh.pop %v748
      %v842 = vtanh.pop %v751
      %v843 = vtanh.pop %v754
      %v844 = vtanh.pop %v757
      %v845 = vtanh.pop %v760
      %v846 = vtanh.pop %v763
      %v847 = vtanh.pop %v766
      %v848 = vtanh.pop %v769
      %v849 = vtanh.pop %v772
      %v850 = vtanh.pop %v775
      %v851 = vtanh.pop %v778
      %v852 = vtanh.pop %v781
      %v853 = vtanh.pop %v784
      %v854 = vtanh.pop %v787
      %v855 = vtanh.pop %v790
      %v856 = vtanh.pop %v793
      %v857 = vtanh.pop %v796
      %v858 = vtanh.pop %v799
      %v859 = vtanh.pop %v802
      %v860 = vtanh.pop %v805
      %v861 = vtanh.pop %v808
      %v862 = vtanh.pop %v811
      %v863 = vtanh.pop %v814
      %v864 = vtanh.pop %v817
      %v865 = vtanh.pop %v820
      %v866 = vtanh.pop %v823
      %v867 = vtanh.pop %v826
      %v868 = vtanh.pop %v829
      %v869 = vtanh.pop %v832
      %v870 = vtanh.pop %v835
      %v871 = vtanh.pop %v838
      %872 = vrot.lane.b32.xlu0 %v840, 32
      %v873 = vpop.permute.xlu0 %872
      %874 = vrot.lane.b32.xlu0 %v841, 32
      %v875 = vpop.permute.xlu0 %874
      %876 = vrot.lane.b32.xlu0 %v842, 32
      %v877 = vpop.permute.xlu0 %876
      %878 = vrot.lane.b32.xlu0 %v843, 32
      %v879 = vpop.permute.xlu0 %878
      %880 = vrot.lane.b32.xlu0 %v844, 32
      %v881 = vpop.permute.xlu0 %880
      %882 = vrot.lane.b32.xlu0 %v845, 32
      %v883 = vpop.permute.xlu0 %882
      %884 = vrot.lane.b32.xlu0 %v846, 32
      %v885 = vpop.permute.xlu0 %884
      %886 = vrot.lane.b32.xlu0 %v847, 32
      %v887 = vpop.permute.xlu0 %886
      %888 = vrot.lane.b32.xlu0 %v848, 32
      %v889 = vpop.permute.xlu0 %888
      %890 = vrot.lane.b32.xlu0 %v849, 32
      %v891 = vpop.permute.xlu0 %890
      %892 = vrot.lane.b32.xlu0 %v850, 32
      %v893 = vpop.permute.xlu0 %892
      %894 = vrot.lane.b32.xlu0 %v851, 32
      %v895 = vpop.permute.xlu0 %894
      %896 = vrot.lane.b32.xlu0 %v852, 32
      %v897 = vpop.permute.xlu0 %896
      %898 = vrot.lane.b32.xlu0 %v853, 32
      %v899 = vpop.permute.xlu0 %898
      %900 = vrot.lane.b32.xlu0 %v854, 32
      %v901 = vpop.permute.xlu0 %900
      %902 = vrot.lane.b32.xlu0 %v855, 32
      %v903 = vpop.permute.xlu0 %902
      %904 = vrot.lane.b32.xlu0 %v856, 32
      %v905 = vpop.permute.xlu0 %904
      %906 = vrot.lane.b32.xlu0 %v857, 32
      %v907 = vpop.permute.xlu0 %906
      %908 = vrot.lane.b32.xlu0 %v858, 32
      %v909 = vpop.permute.xlu0 %908
      %910 = vrot.lane.b32.xlu0 %v859, 32
      %v911 = vpop.permute.xlu0 %910
      %912 = vrot.lane.b32.xlu0 %v860, 32
      %v913 = vpop.permute.xlu0 %912
      %914 = vrot.lane.b32.xlu0 %v861, 32
      %v915 = vpop.permute.xlu0 %914
      %916 = vrot.lane.b32.xlu0 %v862, 32
      %v917 = vpop.permute.xlu0 %916
      %918 = vrot.lane.b32.xlu0 %v863, 32
      %v919 = vpop.permute.xlu0 %918
      %920 = vrot.lane.b32.xlu0 %v864, 32
      %v921 = vpop.permute.xlu0 %920
      %922 = vrot.lane.b32.xlu0 %v865, 32
      %v923 = vpop.permute.xlu0 %922
      %924 = vrot.lane.b32.xlu0 %v866, 32
      %v925 = vpop.permute.xlu0 %924
      %926 = vrot.lane.b32.xlu0 %v867, 32
      %v927 = vpop.permute.xlu0 %926
      %928 = vrot.lane.b32.xlu0 %v868, 32
      %v929 = vpop.permute.xlu0 %928
      %930 = vrot.lane.b32.xlu0 %v869, 32
      %v931 = vpop.permute.xlu0 %930
      %932 = vrot.lane.b32.xlu0 %v870, 32
      %v933 = vpop.permute.xlu0 %932
      %934 = vrot.lane.b32.xlu0 %v871, 32
      %v935 = vpop.permute.xlu0 %934
      %v936 = vadd.f32 %v506, %v873
      %v937 = vadd.f32 %v507, %v875
      %v938 = vadd.f32 %v508, %v877
      %v939 = vadd.f32 %v509, %v879
      %v940 = vadd.f32 %v510, %v881
      %v941 = vadd.f32 %v511, %v883
      %v942 = vadd.f32 %v512, %v885
      %v943 = vadd.f32 %v513, %v887
      %v944 = vadd.f32 %v514, %v889
      %v945 = vadd.f32 %v515, %v891
      %v946 = vadd.f32 %v516, %v893
      %v947 = vadd.f32 %v517, %v895
      %v948 = vadd.f32 %v518, %v897
      %v949 = vadd.f32 %v519, %v899
      %v950 = vadd.f32 %v520, %v901
      %v951 = vadd.f32 %v521, %v903
      %v952 = vadd.f32 %v522, %v905
      %v953 = vadd.f32 %v523, %v907
      %v954 = vadd.f32 %v524, %v909
      %v955 = vadd.f32 %v525, %v911
      %v956 = vadd.f32 %v526, %v913
      %v957 = vadd.f32 %v527, %v915
      %v958 = vadd.f32 %v528, %v917
      %v959 = vadd.f32 %v529, %v919
      %v960 = vadd.f32 %v530, %v921
      %v961 = vadd.f32 %v531, %v923
      %v962 = vadd.f32 %v532, %v925
      %v963 = vadd.f32 %v533, %v927
      %v964 = vadd.f32 %v534, %v929
      %v965 = vadd.f32 %v535, %v931
      %v966 = vadd.f32 %v536, %v933
      %v967 = vadd.f32 %v537, %v935
      %s968 = scalar_lea.vmem %s1, 512
      %v969 = vld [vmem:[%s968] sm:$0xff]
      %v970 = vld [vmem:[%s968 + $0x8] sm:$0xff]
      %v971 = vld [vmem:[%s968 + $0x10] sm:$0xff]
      %v972 = vld [vmem:[%s968 + $0x18] sm:$0xff]
      %v973 = vld [vmem:[%s968 + $0x20] sm:$0xff]
      %v974 = vld [vmem:[%s968 + $0x28] sm:$0xff]
      %v975 = vld [vmem:[%s968 + $0x30] sm:$0xff]
      %v976 = vld [vmem:[%s968 + $0x38] sm:$0xff]
      %v977 = vld [vmem:[%s968 + $0x40] sm:$0xff]
      %v978 = vld [vmem:[%s968 + $0x48] sm:$0xff]
      %v979 = vld [vmem:[%s968 + $0x50] sm:$0xff]
      %v980 = vld [vmem:[%s968 + $0x58] sm:$0xff]
      %v981 = vld [vmem:[%s968 + $0x60] sm:$0xff]
      %v982 = vld [vmem:[%s968 + $0x68] sm:$0xff]
      %v983 = vld [vmem:[%s968 + $0x70] sm:$0xff]
      %v984 = vld [vmem:[%s968 + $0x78] sm:$0xff]
      %s985 = scalar_lea.vmem %s2, 4
      %v986 = vld [vmem:[%s985] sm:$0x1]
      %v988 = vperm.slane %v986, 0
      %990 = vmatpush.msra.mxu0 %v984
      %991 = vmatpush.msra.mxu0 %v983
      %992 = vmatpush.msra.mxu0 %v982
      %993 = vmatpush.msra.mxu0 %v981
      %994 = vmatpush.msra.mxu0 %v980
      %995 = vmatpush.msra.mxu0 %v979
      %996 = vmatpush.msra.mxu0 %v978
      %997 = vmatpush.msra.mxu0 %v977
      %998 = vmatpush.msra.mxu0 %v976
      %999 = vmatpush.msra.mxu0 %v975
      %1000 = vmatpush.msra.mxu0 %v974
      %1001 = vmatpush.msra.mxu0 %v973
      %1002 = vmatpush.msra.mxu0 %v972
      %1003 = vmatpush.msra.mxu0 %v971
      %1004 = vmatpush.msra.mxu0 %v970
      %1005 = vmatpush.msra.mxu0 %v969
      %1006 = vmatmul.f32.gmra.mxu0 %v936
      %v1007 = vpop.f32.mrf.mxu0
      %v1008 = vadd.f32 %v988, %v1007
      %1009 = vmatmul.f32.gmra.mxu0 %v937
      %v1010 = vpop.f32.mrf.mxu0
      %v1011 = vadd.f32 %v988, %v1010
      %1012 = vmatmul.f32.gmra.mxu0 %v938
      %v1013 = vpop.f32.mrf.mxu0
      %v1014 = vadd.f32 %v988, %v1013
      %1015 = vmatmul.f32.gmra.mxu0 %v939
      %v1016 = vpop.f32.mrf.mxu0
      %v1017 = vadd.f32 %v988, %v1016
      %1018 = vmatmul.f32.gmra.mxu0 %v940
      %v1019 = vpop.f32.mrf.mxu0
      %v1020 = vadd.f32 %v988, %v1019
      %1021 = vmatmul.f32.gmra.mxu0 %v941
      %v1022 = vpop.f32.mrf.mxu0
      %v1023 = vadd.f32 %v988, %v1022
      %1024 = vmatmul.f32.gmra.mxu0 %v942
      %v1025 = vpop.f32.mrf.mxu0
      %v1026 = vadd.f32 %v988, %v1025
      %1027 = vmatmul.f32.gmra.mxu0 %v943
      %v1028 = vpop.f32.mrf.mxu0
      %v1029 = vadd.f32 %v988, %v1028
      %1030 = vmatmul.f32.gmra.mxu0 %v944
      %v1031 = vpop.f32.mrf.mxu0
      %v1032 = vadd.f32 %v988, %v1031
      %1033 = vmatmul.f32.gmra.mxu0 %v945
      %v1034 = vpop.f32.mrf.mxu0
      %v1035 = vadd.f32 %v988, %v1034
      %1036 = vmatmul.f32.gmra.mxu0 %v946
      %v1037 = vpop.f32.mrf.mxu0
      %v1038 = vadd.f32 %v988, %v1037
      %1039 = vmatmul.f32.gmra.mxu0 %v947
      %v1040 = vpop.f32.mrf.mxu0
      %v1041 = vadd.f32 %v988, %v1040
      %1042 = vmatmul.f32.gmra.mxu0 %v948
      %v1043 = vpop.f32.mrf.mxu0
      %v1044 = vadd.f32 %v988, %v1043
      %1045 = vmatmul.f32.gmra.mxu0 %v949
      %v1046 = vpop.f32.mrf.mxu0
      %v1047 = vadd.f32 %v988, %v1046
      %1048 = vmatmul.f32.gmra.mxu0 %v950
      %v1049 = vpop.f32.mrf.mxu0
      %v1050 = vadd.f32 %v988, %v1049
      %1051 = vmatmul.f32.gmra.mxu0 %v951
      %v1052 = vpop.f32.mrf.mxu0
      %v1053 = vadd.f32 %v988, %v1052
      %1054 = vmatmul.f32.gmra.mxu0 %v952
      %v1055 = vpop.f32.mrf.mxu0
      %v1056 = vadd.f32 %v988, %v1055
      %1057 = vmatmul.f32.gmra.mxu0 %v953
      %v1058 = vpop.f32.mrf.mxu0
      %v1059 = vadd.f32 %v988, %v1058
      %1060 = vmatmul.f32.gmra.mxu0 %v954
      %v1061 = vpop.f32.mrf.mxu0
      %v1062 = vadd.f32 %v988, %v1061
      %1063 = vmatmul.f32.gmra.mxu0 %v955
      %v1064 = vpop.f32.mrf.mxu0
      %v1065 = vadd.f32 %v988, %v1064
      %1066 = vmatmul.f32.gmra.mxu0 %v956
      %v1067 = vpop.f32.mrf.mxu0
      %v1068 = vadd.f32 %v988, %v1067
      %1069 = vmatmul.f32.gmra.mxu0 %v957
      %v1070 = vpop.f32.mrf.mxu0
      %v1071 = vadd.f32 %v988, %v1070
      %1072 = vmatmul.f32.gmra.mxu0 %v958
      %v1073 = vpop.f32.mrf.mxu0
      %v1074 = vadd.f32 %v988, %v1073
      %1075 = vmatmul.f32.gmra.mxu0 %v959
      %v1076 = vpop.f32.mrf.mxu0
      %v1077 = vadd.f32 %v988, %v1076
      %1078 = vmatmul.f32.gmra.mxu0 %v960
      %v1079 = vpop.f32.mrf.mxu0
      %v1080 = vadd.f32 %v988, %v1079
      %1081 = vmatmul.f32.gmra.mxu0 %v961
      %v1082 = vpop.f32.mrf.mxu0
      %v1083 = vadd.f32 %v988, %v1082
      %1084 = vmatmul.f32.gmra.mxu0 %v962
      %v1085 = vpop.f32.mrf.mxu0
      %v1086 = vadd.f32 %v988, %v1085
      %1087 = vmatmul.f32.gmra.mxu0 %v963
      %v1088 = vpop.f32.mrf.mxu0
      %v1089 = vadd.f32 %v988, %v1088
      %1090 = vmatmul.f32.gmra.mxu0 %v964
      %v1091 = vpop.f32.mrf.mxu0
      %v1092 = vadd.f32 %v988, %v1091
      %1093 = vmatmul.f32.gmra.mxu0 %v965
      %v1094 = vpop.f32.mrf.mxu0
      %v1095 = vadd.f32 %v988, %v1094
      %1096 = vmatmul.f32.gmra.mxu0 %v966
      %v1097 = vpop.f32.mrf.mxu0
      %v1098 = vadd.f32 %v988, %v1097
      %1099 = vmatmul.f32.gmra.mxu0 %v967
      %v1100 = vpop.f32.mrf.mxu0
      %v1101 = vadd.f32 %v988, %v1100
      %1102 = vdwg.mxu0
      %v1103 = vtanh.pop %v1008
      %v1104 = vtanh.pop %v1011
      %v1105 = vtanh.pop %v1014
      %v1106 = vtanh.pop %v1017
      %v1107 = vtanh.pop %v1020
      %v1108 = vtanh.pop %v1023
      %v1109 = vtanh.pop %v1026
      %v1110 = vtanh.pop %v1029
      %v1111 = vtanh.pop %v1032
      %v1112 = vtanh.pop %v1035
      %v1113 = vtanh.pop %v1038
      %v1114 = vtanh.pop %v1041
      %v1115 = vtanh.pop %v1044
      %v1116 = vtanh.pop %v1047
      %v1117 = vtanh.pop %v1050
      %v1118 = vtanh.pop %v1053
      %v1119 = vtanh.pop %v1056
      %v1120 = vtanh.pop %v1059
      %v1121 = vtanh.pop %v1062
      %v1122 = vtanh.pop %v1065
      %v1123 = vtanh.pop %v1068
      %v1124 = vtanh.pop %v1071
      %v1125 = vtanh.pop %v1074
      %v1126 = vtanh.pop %v1077
      %v1127 = vtanh.pop %v1080
      %v1128 = vtanh.pop %v1083
      %v1129 = vtanh.pop %v1086
      %v1130 = vtanh.pop %v1089
      %v1131 = vtanh.pop %v1092
      %v1132 = vtanh.pop %v1095
      %v1133 = vtanh.pop %v1098
      %v1134 = vtanh.pop %v1101
      %s1135 = scalar_lea.vmem %s1, 640
      %v1136 = vld [vmem:[%s1135] sm:$0xff]
      %v1137 = vld [vmem:[%s1135 + $0x8] sm:$0xff]
      %v1138 = vld [vmem:[%s1135 + $0x10] sm:$0xff]
      %v1139 = vld [vmem:[%s1135 + $0x18] sm:$0xff]
      %v1140 = vld [vmem:[%s1135 + $0x20] sm:$0xff]
      %v1141 = vld [vmem:[%s1135 + $0x28] sm:$0xff]
      %v1142 = vld [vmem:[%s1135 + $0x30] sm:$0xff]
      %v1143 = vld [vmem:[%s1135 + $0x38] sm:$0xff]
      %v1144 = vld [vmem:[%s1135 + $0x40] sm:$0xff]
      %v1145 = vld [vmem:[%s1135 + $0x48] sm:$0xff]
      %v1146 = vld [vmem:[%s1135 + $0x50] sm:$0xff]
      %v1147 = vld [vmem:[%s1135 + $0x58] sm:$0xff]
      %v1148 = vld [vmem:[%s1135 + $0x60] sm:$0xff]
      %v1149 = vld [vmem:[%s1135 + $0x68] sm:$0xff]
      %v1150 = vld [vmem:[%s1135 + $0x70] sm:$0xff]
      %v1151 = vld [vmem:[%s1135 + $0x78] sm:$0xff]
      %s1152 = scalar_lea.vmem %s2, 5
      %v1153 = vld [vmem:[%s1152] sm:$0x1]
      %v1155 = vperm.slane %v1153, 0
      %1157 = vmatpush.msra.mxu0 %v1151
      %1158 = vmatpush.msra.mxu0 %v1150
      %1159 = vmatpush.msra.mxu0 %v1149
      %1160 = vmatpush.msra.mxu0 %v1148
      %1161 = vmatpush.msra.mxu0 %v1147
      %1162 = vmatpush.msra.mxu0 %v1146
      %1163 = vmatpush.msra.mxu0 %v1145
      %1164 = vmatpush.msra.mxu0 %v1144
      %1165 = vmatpush.msra.mxu0 %v1143
      %1166 = vmatpush.msra.mxu0 %v1142
      %1167 = vmatpush.msra.mxu0 %v1141
      %1168 = vmatpush.msra.mxu0 %v1140
      %1169 = vmatpush.msra.mxu0 %v1139
      %1170 = vmatpush.msra.mxu0 %v1138
      %1171 = vmatpush.msra.mxu0 %v1137
      %1172 = vmatpush.msra.mxu0 %v1136
      %1173 = vmatmul.f32.gmra.mxu0 %v1103
      %v1174 = vpop.f32.mrf.mxu0
      %v1175 = vadd.f32 %v1155, %v1174
      %1176 = vmatmul.f32.gmra.mxu0 %v1104
      %v1177 = vpop.f32.mrf.mxu0
      %v1178 = vadd.f32 %v1155, %v1177
      %1179 = vmatmul.f32.gmra.mxu0 %v1105
      %v1180 = vpop.f32.mrf.mxu0
      %v1181 = vadd.f32 %v1155, %v1180
      %1182 = vmatmul.f32.gmra.mxu0 %v1106
      %v1183 = vpop.f32.mrf.mxu0
      %v1184 = vadd.f32 %v1155, %v1183
      %1185 = vmatmul.f32.gmra.mxu0 %v1107
      %v1186 = vpop.f32.mrf.mxu0
      %v1187 = vadd.f32 %v1155, %v1186
      %1188 = vmatmul.f32.gmra.mxu0 %v1108
      %v1189 = vpop.f32.mrf.mxu0
      %v1190 = vadd.f32 %v1155, %v1189
      %1191 = vmatmul.f32.gmra.mxu0 %v1109
      %v1192 = vpop.f32.mrf.mxu0
      %v1193 = vadd.f32 %v1155, %v1192
      %1194 = vmatmul.f32.gmra.mxu0 %v1110
      %v1195 = vpop.f32.mrf.mxu0
      %v1196 = vadd.f32 %v1155, %v1195
      %1197 = vmatmul.f32.gmra.mxu0 %v1111
      %v1198 = vpop.f32.mrf.mxu0
      %v1199 = vadd.f32 %v1155, %v1198
      %1200 = vmatmul.f32.gmra.mxu0 %v1112
      %v1201 = vpop.f32.mrf.mxu0
      %v1202 = vadd.f32 %v1155, %v1201
      %1203 = vmatmul.f32.gmra.mxu0 %v1113
      %v1204 = vpop.f32.mrf.mxu0
      %v1205 = vadd.f32 %v1155, %v1204
      %1206 = vmatmul.f32.gmra.mxu0 %v1114
      %v1207 = vpop.f32.mrf.mxu0
      %v1208 = vadd.f32 %v1155, %v1207
      %1209 = vmatmul.f32.gmra.mxu0 %v1115
      %v1210 = vpop.f32.mrf.mxu0
      %v1211 = vadd.f32 %v1155, %v1210
      %1212 = vmatmul.f32.gmra.mxu0 %v1116
      %v1213 = vpop.f32.mrf.mxu0
      %v1214 = vadd.f32 %v1155, %v1213
      %1215 = vmatmul.f32.gmra.mxu0 %v1117
      %v1216 = vpop.f32.mrf.mxu0
      %v1217 = vadd.f32 %v1155, %v1216
      %1218 = vmatmul.f32.gmra.mxu0 %v1118
      %v1219 = vpop.f32.mrf.mxu0
      %v1220 = vadd.f32 %v1155, %v1219
      %1221 = vmatmul.f32.gmra.mxu0 %v1119
      %v1222 = vpop.f32.mrf.mxu0
      %v1223 = vadd.f32 %v1155, %v1222
      %1224 = vmatmul.f32.gmra.mxu0 %v1120
      %v1225 = vpop.f32.mrf.mxu0
      %v1226 = vadd.f32 %v1155, %v1225
      %1227 = vmatmul.f32.gmra.mxu0 %v1121
      %v1228 = vpop.f32.mrf.mxu0
      %v1229 = vadd.f32 %v1155, %v1228
      %1230 = vmatmul.f32.gmra.mxu0 %v1122
      %v1231 = vpop.f32.mrf.mxu0
      %v1232 = vadd.f32 %v1155, %v1231
      %1233 = vmatmul.f32.gmra.mxu0 %v1123
      %v1234 = vpop.f32.mrf.mxu0
      %v1235 = vadd.f32 %v1155, %v1234
      %1236 = vmatmul.f32.gmra.mxu0 %v1124
      %v1237 = vpop.f32.mrf.mxu0
      %v1238 = vadd.f32 %v1155, %v1237
      %1239 = vmatmul.f32.gmra.mxu0 %v1125
      %v1240 = vpop.f32.mrf.mxu0
      %v1241 = vadd.f32 %v1155, %v1240
      %1242 = vmatmul.f32.gmra.mxu0 %v1126
      %v1243 = vpop.f32.mrf.mxu0
      %v1244 = vadd.f32 %v1155, %v1243
      %1245 = vmatmul.f32.gmra.mxu0 %v1127
      %v1246 = vpop.f32.mrf.mxu0
      %v1247 = vadd.f32 %v1155, %v1246
      %1248 = vmatmul.f32.gmra.mxu0 %v1128
      %v1249 = vpop.f32.mrf.mxu0
      %v1250 = vadd.f32 %v1155, %v1249
      %1251 = vmatmul.f32.gmra.mxu0 %v1129
      %v1252 = vpop.f32.mrf.mxu0
      %v1253 = vadd.f32 %v1155, %v1252
      %1254 = vmatmul.f32.gmra.mxu0 %v1130
      %v1255 = vpop.f32.mrf.mxu0
      %v1256 = vadd.f32 %v1155, %v1255
      %1257 = vmatmul.f32.gmra.mxu0 %v1131
      %v1258 = vpop.f32.mrf.mxu0
      %v1259 = vadd.f32 %v1155, %v1258
      %1260 = vmatmul.f32.gmra.mxu0 %v1132
      %v1261 = vpop.f32.mrf.mxu0
      %v1262 = vadd.f32 %v1155, %v1261
      %1263 = vmatmul.f32.gmra.mxu0 %v1133
      %v1264 = vpop.f32.mrf.mxu0
      %v1265 = vadd.f32 %v1155, %v1264
      %1266 = vmatmul.f32.gmra.mxu0 %v1134
      %v1267 = vpop.f32.mrf.mxu0
      %v1268 = vadd.f32 %v1155, %v1267
      %1269 = vdwg.mxu0
      %1270 = vst [vmem:[%s172] sm:$0xff] %v1175
      %1271 = vst [vmem:[%s172 + $0x8] sm:$0xff] %v1178
      %1272 = vst [vmem:[%s172 + $0x10] sm:$0xff] %v1181
      %1273 = vst [vmem:[%s172 + $0x18] sm:$0xff] %v1184
      %1274 = vst [vmem:[%s172 + $0x20] sm:$0xff] %v1187
      %1275 = vst [vmem:[%s172 + $0x28] sm:$0xff] %v1190
      %1276 = vst [vmem:[%s172 + $0x30] sm:$0xff] %v1193
      %1277 = vst [vmem:[%s172 + $0x38] sm:$0xff] %v1196
      %1278 = vst [vmem:[%s172 + $0x40] sm:$0xff] %v1199
      %1279 = vst [vmem:[%s172 + $0x48] sm:$0xff] %v1202
      %1280 = vst [vmem:[%s172 + $0x50] sm:$0xff] %v1205
      %1281 = vst [vmem:[%s172 + $0x58] sm:$0xff] %v1208
      %1282 = vst [vmem:[%s172 + $0x60] sm:$0xff] %v1211
      %1283 = vst [vmem:[%s172 + $0x68] sm:$0xff] %v1214
      %1284 = vst [vmem:[%s172 + $0x70] sm:$0xff] %v1217
      %1285 = vst [vmem:[%s172 + $0x78] sm:$0xff] %v1220
      %1286 = vst [vmem:[%s172 + $0x80] sm:$0xff] %v1223
      %1287 = vst [vmem:[%s172 + $0x88] sm:$0xff] %v1226
      %1288 = vst [vmem:[%s172 + $0x90] sm:$0xff] %v1229
      %1289 = vst [vmem:[%s172 + $0x98] sm:$0xff] %v1232
      %1290 = vst [vmem:[%s172 + $0xa0] sm:$0xff] %v1235
      %1291 = vst [vmem:[%s172 + $0xa8] sm:$0xff] %v1238
      %1292 = vst [vmem:[%s172 + $0xb0] sm:$0xff] %v1241
      %1293 = vst [vmem:[%s172 + $0xb8] sm:$0xff] %v1244
      %1294 = vst [vmem:[%s172 + $0xc0] sm:$0xff] %v1247
      %1295 = vst [vmem:[%s172 + $0xc8] sm:$0xff] %v1250
      %1296 = vst [vmem:[%s172 + $0xd0] sm:$0xff] %v1253
      %1297 = vst [vmem:[%s172 + $0xd8] sm:$0xff] %v1256
      %1298 = vst [vmem:[%s172 + $0xe0] sm:$0xff] %v1259
      %1299 = vst [vmem:[%s172 + $0xe8] sm:$0xff] %v1262
      %1300 = vst [vmem:[%s172 + $0xf0] sm:$0xff] %v1265
      %1301 = vst [vmem:[%s172 + $0xf8] sm:$0xff] %v1268
      %s1302 = smul.u32 32, %s14
      %p1303 = scmp.lt.s32.totalorder %s1302, 63
      %s1304 = scalar_select %p1303, %s1302, 63
      %s1305 = smul.addr %s1304, 8
      %s1306 = scalar_lea.vmem %s3, %s1305
      // Predicated region
      $region33: #{dnn_onehot_forward.1} parent=31 // pred_check
        %p1307 = pneg %p100
      $region34: #{dnn_onehot_forward.1} parent=31 // pred_check_branch
        %1309 = sbr.rel (%p1307) target = $region36
      $region35: #{dnn_onehot_forward.1} parent=31 // pred_region
        %s1310 = smul.u32 32, %s14
      $region36: #{dnn_onehot_forward.1} parent=31 // pred_fallthru
        _
    $region32: #{dnn_onehot_forward.1} parent=5 // pred_fallthru
      _
    %p1311 = scmp.le.s32.totalorder 2, %s9
    // Predicated region
    $region37: #{dnn_onehot_forward.1} parent=5 // pred_check
      %p1312 = pneg %p1311
    $region38: #{dnn_onehot_forward.1} parent=5 // pred_check_branch
      %1314 = sbr.rel (%p1312) target = $region40
    $region39: #{dnn_onehot_forward.1} parent=5 // pred_region
      %s1315 = ssub.s32 %s9, 2
      // Predicated region
      $region41: #{dnn_onehot_forward.1} parent=39 // pred_check
        %p1316 = pneg %p106
      $region42: #{dnn_onehot_forward.1} parent=39 // pred_check_branch
        %1318 = sbr.rel (%p1316) target = $region44
      $region43: #{dnn_onehot_forward.1} parent=39 // pred_region
        %s1319 = smul.u32 32, %s15
        %p1320 = scmp.lt.s32.totalorder %s1319, 63
        %s1321 = scalar_select %p1320, %s1319, 63
        %s1322 = smul.addr %s1321, 8
        %s1323 = scalar_lea.vmem %s3, %s1322
      $region44: #{dnn_onehot_forward.1} parent=39 // pred_fallthru
        _
    $region40: #{dnn_onehot_forward.1} parent=5 // pred_fallthru
      _
  $region6: #{dnn_onehot_forward.1} parent=0 // loop_footer
    %s13 = sadd.s32 1, %s9
  $region7: #{dnn_onehot_forward.1} parent=0 // loop_footer_branch
    %8 = sbr.rel target = $region3
  $region8: #{dnn_onehot_forward.1} parent=0 // loop_exit
    _

</llo_original>
